<compile_context>
chip_gen: v7x
topology: tpu7x:2x2x1
jax: 0.10.0
libtpu: 0.0.40
codegen_flags: <defaults>
</compile_context>

<pallas_src>
import jax
import jax.numpy as jnp
from jax.experimental import pallas as pl
from jax.experimental.pallas import tpu as pltpu


EMBED_DIM = 256
HIDDEN_DIM = 128
NUM_LABELS = 2


def _sigmoid(x):
    # sigmoid(x) = 0.5 * (tanh(x/2) + 1): a single EUP push instead of
    # exp + reciprocal; matches jax.nn.sigmoid to ~1e-7.
    return 0.5 * (jnp.tanh(0.5 * x) + 1.0)


# ---------------------------------------------------------------------------
# Fused kernel: per grid step, one block input-projection GEMM followed by
# t_blk statically-unrolled recurrence steps.
# ---------------------------------------------------------------------------
def lstm_fused_kernel(x_ref, wih_ref, whh_ref, b_ref, hout_ref, h_scr, c_scr):
    H = HIDDEN_DIM
    rows = x_ref.shape[0]            # t_blk * B  (time-major rows)
    B = h_scr.shape[0]
    t_blk = rows // B

    @pl.when(pl.program_id(0) == 0)
    def _():
        h_scr[...] = jnp.zeros_like(h_scr)
        c_scr[...] = jnp.zeros_like(c_scr)

    # Fused input projection for the whole time block: one MXU GEMM over all
    # t_blk*B rows, bias (b_ih + b_hh) folded in once (hoisted out of the
    # per-step loop). f32 accumulation.
    gates_x = (jnp.dot(x_ref[...], wih_ref[...],
                       preferred_element_type=jnp.float32)
               + b_ref[...])                               # (t_blk*B, 4H) f32

    h = h_scr[...]                                         # (B, H) f32
    c = c_scr[...]                                         # (B, H) f32

    # Static Python unroll: `s` is a compile-time int -> static slices. Only
    # the small h @ W_hh^T (K = 128) matmul sits on the serial h->h chain.
    for s in range(t_blk):
        g_x = gates_x[s * B:(s + 1) * B, :]                # rows of step s
        gates = g_x + jnp.dot(h.astype(whh_ref.dtype), whh_ref[...],
                              preferred_element_type=jnp.float32)
        # PyTorch LSTM gate order: input, forget, cell(g), output.
        i_g = _sigmoid(gates[:, 0 * H:1 * H])
        f_g = _sigmoid(gates[:, 1 * H:2 * H])
        g_g = jnp.tanh(gates[:, 2 * H:3 * H])
        o_g = _sigmoid(gates[:, 3 * H:4 * H])
        c = f_g * c + i_g * g_g
        h = o_g * jnp.tanh(c)

    h_scr[...] = h
    c_scr[...] = c

    # Lane-dense (B, 128) output; constant block index -> VMEM-resident, the
    # single write on the final grid step is what reaches HBM.
    @pl.when(pl.program_id(0) == pl.num_programs(0) - 1)
    def _():
        hout_ref[...] = h


def _choose_t_block(T, B):
    """Largest divisor of T (<= 32) whose row count t_blk*B is sublane-aligned.

    Never falls back to a full-T unroll (compile-time / vreg-pressure hazard
    for long ragged T); worst case degrades to t_blk=1, which is still correct.
    """
    for align in (16, 8, 1):
        for cand in (32, 16, 8, 4, 2, 1):
            if T % cand == 0 and (cand * B) % align == 0:
                return cand
    return 1


def sequence_lstm_classifier(ids, emb_table, w_ih, w_hh, b_ih, b_hh,
                             w_fc, b_fc, *, mxu_dtype=jnp.bfloat16):
    """ids: (B, T) int32 token ids. Returns logits (B, NUM_LABELS) float32."""
    B, T = ids.shape
    E, H = EMBED_DIM, HIDDEN_DIM

    # Time-major embedding gather in the MXU dtype. Casting the table first
    # halves the gather's HBM traffic (identical values to gather-then-cast);
    # transposing the tiny (B, T) id matrix is free and the reshape to
    # (T*B, E) is contiguous, so the kernel streams one dense slab per block.
    emb_cast = emb_table.astype(mxu_dtype)
    x_tm = emb_cast[ids.T].reshape(T * B, E)               # (T*B, E)

    # Weight prep (once, outside the kernel): transposed for (M,K)@(K,N),
    # MXU operands in bf16 (or f32 when requested), biases folded.
    wih_t = w_ih.T.astype(mxu_dtype)                       # (E, 4H)
    whh_t = w_hh.T.astype(mxu_dtype)                       # (H, 4H)
    bias = (b_ih + b_hh)[None, :].astype(jnp.float32)      # (1, 4H)

    t_blk = _choose_t_block(T, B)
    grid = (T // t_blk,)

    grid_spec = pltpu.PrefetchScalarGridSpec(
        num_scalar_prefetch=0,
        grid=grid,
        in_specs=[
            pl.BlockSpec((t_blk * B, E), lambda i: (i, 0)),   # x time block
            pl.BlockSpec((E, 4 * H), lambda i: (0, 0)),       # W_ih^T resident
            pl.BlockSpec((H, 4 * H), lambda i: (0, 0)),       # W_hh^T resident
            pl.BlockSpec((1, 4 * H), lambda i: (0, 0)),       # folded bias
        ],
        out_specs=pl.BlockSpec((B, H), lambda i: (0, 0)),     # final hidden
        scratch_shapes=[
            pltpu.VMEM((B, H), jnp.float32),   # h state (persists over grid)
            pltpu.VMEM((B, H), jnp.float32),   # c state
        ],
    )
    h_last = pl.pallas_call(
        lstm_fused_kernel,
        out_shape=jax.ShapeDtypeStruct((B, H), jnp.float32),
        grid_spec=grid_spec,
        compiler_params=pltpu.CompilerParams(
            dimension_semantics=("arbitrary",)),   # true time recurrence
    )(x_tm, wih_t, whh_t, bias)

    # Final Linear (128 -> num_labels) in plain JAX glue: a 2-wide lane dim
    # inside the kernel would force masked partial stores.
    return h_last @ w_fc.T.astype(jnp.float32) + b_fc.astype(jnp.float32)


# ---------------------------------------------------------------------------
# Pure-JAX reference of the PyTorch forward (for the correctness check).
# ---------------------------------------------------------------------------
def reference_forward(ids, emb_table, w_ih, w_hh, b_ih, b_hh, w_fc, b_fc):
    x = emb_table[ids].astype(jnp.float32)   # (B, T, E)
    B, T, _ = x.shape
    H = HIDDEN_DIM

    def step(carry, x_t):
        h, c = carry
        gates = x_t @ w_ih.T + b_ih + h @ w_hh.T + b_hh
        i_g = jax.nn.sigmoid(gates[:, 0 * H:1 * H])
        f_g = jax.nn.sigmoid(gates[:, 1 * H:2 * H])
        g_g = jnp.tanh(gates[:, 2 * H:3 * H])
        o_g = jax.nn.sigmoid(gates[:, 3 * H:4 * H])
        c = f_g * c + i_g * g_g
        h = o_g * jnp.tanh(c)
        return (h, c), None

    h0 = jnp.zeros((B, H), jnp.float32)
    c0 = jnp.zeros((B, H), jnp.float32)
    (h_T, _), _ = jax.lax.scan(step, (h0, c0), jnp.transpose(x, (1, 0, 2)))
    return h_T @ w_fc.T + b_fc


if __name__ == "__main__":
    VOCAB = 1000
    E, H, L = EMBED_DIM, HIDDEN_DIM, NUM_LABELS

    key = jax.random.PRNGKey(0)
    k_ids, k_emb, k_wih, k_whh, k_bih, k_bhh, k_wfc, k_bfc = jax.random.split(key, 8)

    # Deterministic synthetic parameters (shapes per the torch module).
    emb_table = jax.random.normal(k_emb, (VOCAB, E), jnp.float32) * 0.1
    w_ih = jax.random.normal(k_wih, (4 * H, E), jnp.float32) * 0.05
    w_hh = jax.random.normal(k_whh, (4 * H, H), jnp.float32) * 0.05
    b_ih = jax.random.normal(k_bih, (4 * H,), jnp.float32) * 0.05
    b_hh = jax.random.normal(k_bhh, (4 * H,), jnp.float32) * 0.05
    w_fc = jax.random.normal(k_wfc, (L, H), jnp.float32) * 0.05
    b_fc = jax.random.normal(k_bfc, (L,), jnp.float32) * 0.05

    # (B, T) = (2, 8): single-grid-step path; (2, 48): multi-block recurrence
    # with the h/c scratch carried across grid iterations.
    for cfg_idx, (B, T) in enumerate([(2, 8), (2, 48)]):
        k_cfg = jax.random.fold_in(k_ids, cfg_idx)
        ids = jax.random.randint(k_cfg, (B, T), 0, VOCAB, dtype=jnp.int32)

        ref = reference_forward(ids, emb_table, w_ih, w_hh, b_ih, b_hh,
                                w_fc, b_fc)

        # f32 MXU operands: reference-fidelity path, tight tolerance.
        logits_f32 = sequence_lstm_classifier(ids, emb_table, w_ih, w_hh,
                                              b_ih, b_hh, w_fc, b_fc,
                                              mxu_dtype=jnp.float32)
        logits_f32 = jax.block_until_ready(logits_f32)
        assert logits_f32.shape == (B, L)
        assert jnp.allclose(logits_f32, ref, atol=1e-3, rtol=1e-3), (
            (B, T), logits_f32, ref)

        # bf16 MXU operands (default fast path): looser tolerance (bf16 h /
        # embedding rounding compounds over T steps).
        logits_bf16 = sequence_lstm_classifier(ids, emb_table, w_ih, w_hh,
                                               b_ih, b_hh, w_fc, b_fc)
        logits_bf16 = jax.block_until_ready(logits_bf16)
        assert logits_bf16.shape == (B, L)
        assert jnp.allclose(logits_bf16, ref, atol=2e-2, rtol=2e-2), (
            (B, T), logits_bf16, ref)

    print("KERNEL_OK")
</pallas_src>

<mosaic_0001>
module attributes {stable_mosaic.version = 11 : i64} {
  func.func @lstm_fused_kernel(%arg0: i32, %arg1: memref<16x256xf32, #tpu.memory_space<vmem>>, %arg2: memref<256x512xf32, #tpu.memory_space<vmem>>, %arg3: memref<128x512xf32, #tpu.memory_space<vmem>>, %arg4: memref<1x512xf32, #tpu.memory_space<vmem>>, %arg5: memref<2x128xf32, #tpu.memory_space<vmem>>, %arg6: memref<2x128xf32, #tpu.memory_space<vmem>>, %arg7: memref<2x128xf32, #tpu.memory_space<vmem>>) attributes {dimension_semantics = [#tpu.dimension_semantics<arbitrary>], iteration_bounds = array<i64: 1>, scalar_prefetch = 0 : i64, scratch_operands = 2 : i64, tpu.core_type = #tpu.core_type<tc>, window_params = [{transform_indices = @transform_0, window_bounds = array<i64: 16, 256>}, {pipeline_mode = #tpu.pipeline_mode<synchronous>, transform_indices = @transform_1, window_bounds = array<i64: 256, 512>}, {pipeline_mode = #tpu.pipeline_mode<synchronous>, transform_indices = @transform_2, window_bounds = array<i64: 128, 512>}, {pipeline_mode = #tpu.pipeline_mode<synchronous>, transform_indices = @transform_3, window_bounds = array<i64: 1, 512>}, {pipeline_mode = #tpu.pipeline_mode<synchronous>, transform_indices = @transform_4, window_bounds = array<i64: 2, 128>}]} {
    %c0_i32 = arith.constant 0 : i32
    %0 = arith.cmpi eq, %arg0, %c0_i32 : i32
    %1 = arith.extui %0 : i1 to i32
    %c0_i32_0 = arith.constant 0 : i32
    %2 = arith.cmpi ne, %1, %c0_i32_0 : i32
    scf.if %2 {
      %cst_112 = arith.constant 0.000000e+00 : f32
      %296 = vector.broadcast %cst_112 : f32 to vector<2x128xf32>
      %c0_113 = arith.constant 0 : index
      %c0_114 = arith.constant 0 : index
      %297 = vector.load %arg6[%c0_113, %c0_114] : memref<2x128xf32, #tpu.memory_space<vmem>>, vector<2x128xf32>
      tpu.vector_store %arg6[%c0_113, %c0_114], %296 {strides = array<i32>} : memref<2x128xf32, #tpu.memory_space<vmem>>, vector<2x128xf32>,
      %cst_115 = arith.constant 0.000000e+00 : f32
      %298 = vector.broadcast %cst_115 : f32 to vector<2x128xf32>
      %c0_116 = arith.constant 0 : index
      %c0_117 = arith.constant 0 : index
      %299 = vector.load %arg7[%c0_116, %c0_117] : memref<2x128xf32, #tpu.memory_space<vmem>>, vector<2x128xf32>
      tpu.vector_store %arg7[%c0_116, %c0_117], %298 {strides = array<i32>} : memref<2x128xf32, #tpu.memory_space<vmem>>, vector<2x128xf32>,
    } else {
    }
    %c0 = arith.constant 0 : index
    %c0_1 = arith.constant 0 : index
    %3 = vector.load %arg1[%c0, %c0_1] : memref<16x256xf32, #tpu.memory_space<vmem>>, vector<16x256xf32>
    %c0_2 = arith.constant 0 : index
    %c0_3 = arith.constant 0 : index
    %4 = vector.load %arg2[%c0_2, %c0_3] : memref<256x512xf32, #tpu.memory_space<vmem>>, vector<256x512xf32>
    %cst = arith.constant dense<0.000000e+00> : vector<16x512xf32>
    %5 = tpu.matmul %3, %4, %cst {dimension_numbers = #tpu.dot_dimension_numbers<[1], [0], [0], [1], [0, 0, 1, 1], [], []>} : vector<16x256xf32>, vector<256x512xf32>, vector<16x512xf32> -> vector<16x512xf32>
    %c0_4 = arith.constant 0 : index
    %c0_5 = arith.constant 0 : index
    %6 = vector.load %arg4[%c0_4, %c0_5] : memref<1x512xf32, #tpu.memory_space<vmem>>, vector<1x512xf32>
    %7 = vector.broadcast %6 : vector<1x512xf32> to vector<16x512xf32>
    %8 = arith.addf %5, %7 : vector<16x512xf32>
    %c0_6 = arith.constant 0 : index
    %c0_7 = arith.constant 0 : index
    %9 = vector.load %arg6[%c0_6, %c0_7] : memref<2x128xf32, #tpu.memory_space<vmem>>, vector<2x128xf32>
    %c0_8 = arith.constant 0 : index
    %c0_9 = arith.constant 0 : index
    %10 = vector.load %arg7[%c0_8, %c0_9] : memref<2x128xf32, #tpu.memory_space<vmem>>, vector<2x128xf32>
    %11 = vector.extract_strided_slice %8 {offsets = [0, 0], sizes = [2, 512], strides = [1, 1]} : vector<16x512xf32> to vector<2x512xf32>
    %c0_10 = arith.constant 0 : index
    %c0_11 = arith.constant 0 : index
    %12 = vector.load %arg3[%c0_10, %c0_11] : memref<128x512xf32, #tpu.memory_space<vmem>>, vector<128x512xf32>
    %cst_12 = arith.constant dense<0.000000e+00> : vector<2x512xf32>
    %13 = tpu.matmul %9, %12, %cst_12 {dimension_numbers = #tpu.dot_dimension_numbers<[1], [0], [0], [1], [0, 0, 1, 1], [], []>} : vector<2x128xf32>, vector<128x512xf32>, vector<2x512xf32> -> vector<2x512xf32>
    %14 = arith.addf %11, %13 : vector<2x512xf32>
    %15 = vector.extract_strided_slice %14 {offsets = [0, 0], sizes = [2, 128], strides = [1, 1]} : vector<2x512xf32> to vector<2x128xf32>
    %cst_13 = arith.constant 5.000000e-01 : f32
    %16 = vector.broadcast %cst_13 : f32 to vector<2x128xf32>
    %17 = arith.mulf %16, %15 : vector<2x128xf32>
    %18 = math.tanh %17 : vector<2x128xf32>
    %cst_14 = arith.constant 1.000000e+00 : f32
    %19 = vector.broadcast %cst_14 : f32 to vector<2x128xf32>
    %20 = arith.addf %18, %19 : vector<2x128xf32>
    %cst_15 = arith.constant 5.000000e-01 : f32
    %21 = vector.broadcast %cst_15 : f32 to vector<2x128xf32>
    %22 = arith.mulf %21, %20 : vector<2x128xf32>
    %23 = vector.extract_strided_slice %14 {offsets = [0, 128], sizes = [2, 128], strides = [1, 1]} : vector<2x512xf32> to vector<2x128xf32>
    %cst_16 = arith.constant 5.000000e-01 : f32
    %24 = vector.broadcast %cst_16 : f32 to vector<2x128xf32>
    %25 = arith.mulf %24, %23 : vector<2x128xf32>
    %26 = math.tanh %25 : vector<2x128xf32>
    %cst_17 = arith.constant 1.000000e+00 : f32
    %27 = vector.broadcast %cst_17 : f32 to vector<2x128xf32>
    %28 = arith.addf %26, %27 : vector<2x128xf32>
    %cst_18 = arith.constant 5.000000e-01 : f32
    %29 = vector.broadcast %cst_18 : f32 to vector<2x128xf32>
    %30 = arith.mulf %29, %28 : vector<2x128xf32>
    %31 = vector.extract_strided_slice %14 {offsets = [0, 256], sizes = [2, 128], strides = [1, 1]} : vector<2x512xf32> to vector<2x128xf32>
    %32 = math.tanh %31 : vector<2x128xf32>
    %33 = vector.extract_strided_slice %14 {offsets = [0, 384], sizes = [2, 128], strides = [1, 1]} : vector<2x512xf32> to vector<2x128xf32>
    %cst_19 = arith.constant 5.000000e-01 : f32
    %34 = vector.broadcast %cst_19 : f32 to vector<2x128xf32>
    %35 = arith.mulf %34, %33 : vector<2x128xf32>
    %36 = math.tanh %35 : vector<2x128xf32>
    %cst_20 = arith.constant 1.000000e+00 : f32
    %37 = vector.broadcast %cst_20 : f32 to vector<2x128xf32>
    %38 = arith.addf %36, %37 : vector<2x128xf32>
    %cst_21 = arith.constant 5.000000e-01 : f32
    %39 = vector.broadcast %cst_21 : f32 to vector<2x128xf32>
    %40 = arith.mulf %39, %38 : vector<2x128xf32>
    %41 = arith.mulf %30, %10 : vector<2x128xf32>
    %42 = arith.mulf %22, %32 : vector<2x128xf32>
    %43 = arith.addf %41, %42 : vector<2x128xf32>
    %44 = math.tanh %43 : vector<2x128xf32>
    %45 = arith.mulf %40, %44 : vector<2x128xf32>
    %46 = vector.extract_strided_slice %8 {offsets = [2, 0], sizes = [2, 512], strides = [1, 1]} : vector<16x512xf32> to vector<2x512xf32>
    %c0_22 = arith.constant 0 : index
    %c0_23 = arith.constant 0 : index
    %47 = vector.load %arg3[%c0_22, %c0_23] : memref<128x512xf32, #tpu.memory_space<vmem>>, vector<128x512xf32>
    %cst_24 = arith.constant dense<0.000000e+00> : vector<2x512xf32>
    %48 = tpu.matmul %45, %47, %cst_24 {dimension_numbers = #tpu.dot_dimension_numbers<[1], [0], [0], [1], [0, 0, 1, 1], [], []>} : vector<2x128xf32>, vector<128x512xf32>, vector<2x512xf32> -> vector<2x512xf32>
    %49 = arith.addf %46, %48 : vector<2x512xf32>
    %50 = vector.extract_strided_slice %49 {offsets = [0, 0], sizes = [2, 128], strides = [1, 1]} : vector<2x512xf32> to vector<2x128xf32>
    %cst_25 = arith.constant 5.000000e-01 : f32
    %51 = vector.broadcast %cst_25 : f32 to vector<2x128xf32>
    %52 = arith.mulf %51, %50 : vector<2x128xf32>
    %53 = math.tanh %52 : vector<2x128xf32>
    %cst_26 = arith.constant 1.000000e+00 : f32
    %54 = vector.broadcast %cst_26 : f32 to vector<2x128xf32>
    %55 = arith.addf %53, %54 : vector<2x128xf32>
    %cst_27 = arith.constant 5.000000e-01 : f32
    %56 = vector.broadcast %cst_27 : f32 to vector<2x128xf32>
    %57 = arith.mulf %56, %55 : vector<2x128xf32>
    %58 = vector.extract_strided_slice %49 {offsets = [0, 128], sizes = [2, 128], strides = [1, 1]} : vector<2x512xf32> to vector<2x128xf32>
    %cst_28 = arith.constant 5.000000e-01 : f32
    %59 = vector.broadcast %cst_28 : f32 to vector<2x128xf32>
    %60 = arith.mulf %59, %58 : vector<2x128xf32>
    %61 = math.tanh %60 : vector<2x128xf32>
    %cst_29 = arith.constant 1.000000e+00 : f32
    %62 = vector.broadcast %cst_29 : f32 to vector<2x128xf32>
    %63 = arith.addf %61, %62 : vector<2x128xf32>
    %cst_30 = arith.constant 5.000000e-01 : f32
    %64 = vector.broadcast %cst_30 : f32 to vector<2x128xf32>
    %65 = arith.mulf %64, %63 : vector<2x128xf32>
    %66 = vector.extract_strided_slice %49 {offsets = [0, 256], sizes = [2, 128], strides = [1, 1]} : vector<2x512xf32> to vector<2x128xf32>
    %67 = math.tanh %66 : vector<2x128xf32>
    %68 = vector.extract_strided_slice %49 {offsets = [0, 384], sizes = [2, 128], strides = [1, 1]} : vector<2x512xf32> to vector<2x128xf32>
    %cst_31 = arith.constant 5.000000e-01 : f32
    %69 = vector.broadcast %cst_31 : f32 to vector<2x128xf32>
    %70 = arith.mulf %69, %68 : vector<2x128xf32>
    %71 = math.tanh %70 : vector<2x128xf32>
    %cst_32 = arith.constant 1.000000e+00 : f32
    %72 = vector.broadcast %cst_32 : f32 to vector<2x128xf32>
    %73 = arith.addf %71, %72 : vector<2x128xf32>
    %cst_33 = arith.constant 5.000000e-01 : f32
    %74 = vector.broadcast %cst_33 : f32 to vector<2x128xf32>
    %75 = arith.mulf %74, %73 : vector<2x128xf32>
    %76 = arith.mulf %65, %43 : vector<2x128xf32>
    %77 = arith.mulf %57, %67 : vector<2x128xf32>
    %78 = arith.addf %76, %77 : vector<2x128xf32>
    %79 = math.tanh %78 : vector<2x128xf32>
    %80 = arith.mulf %75, %79 : vector<2x128xf32>
    %81 = vector.extract_strided_slice %8 {offsets = [4, 0], sizes = [2, 512], strides = [1, 1]} : vector<16x512xf32> to vector<2x512xf32>
    %c0_34 = arith.constant 0 : index
    %c0_35 = arith.constant 0 : index
    %82 = vector.load %arg3[%c0_34, %c0_35] : memref<128x512xf32, #tpu.memory_space<vmem>>, vector<128x512xf32>
    %cst_36 = arith.constant dense<0.000000e+00> : vector<2x512xf32>
    %83 = tpu.matmul %80, %82, %cst_36 {dimension_numbers = #tpu.dot_dimension_numbers<[1], [0], [0], [1], [0, 0, 1, 1], [], []>} : vector<2x128xf32>, vector<128x512xf32>, vector<2x512xf32> -> vector<2x512xf32>
    %84 = arith.addf %81, %83 : vector<2x512xf32>
    %85 = vector.extract_strided_slice %84 {offsets = [0, 0], sizes = [2, 128], strides = [1, 1]} : vector<2x512xf32> to vector<2x128xf32>
    %cst_37 = arith.constant 5.000000e-01 : f32
    %86 = vector.broadcast %cst_37 : f32 to vector<2x128xf32>
    %87 = arith.mulf %86, %85 : vector<2x128xf32>
    %88 = math.tanh %87 : vector<2x128xf32>
    %cst_38 = arith.constant 1.000000e+00 : f32
    %89 = vector.broadcast %cst_38 : f32 to vector<2x128xf32>
    %90 = arith.addf %88, %89 : vector<2x128xf32>
    %cst_39 = arith.constant 5.000000e-01 : f32
    %91 = vector.broadcast %cst_39 : f32 to vector<2x128xf32>
    %92 = arith.mulf %91, %90 : vector<2x128xf32>
    %93 = vector.extract_strided_slice %84 {offsets = [0, 128], sizes = [2, 128], strides = [1, 1]} : vector<2x512xf32> to vector<2x128xf32>
    %cst_40 = arith.constant 5.000000e-01 : f32
    %94 = vector.broadcast %cst_40 : f32 to vector<2x128xf32>
    %95 = arith.mulf %94, %93 : vector<2x128xf32>
    %96 = math.tanh %95 : vector<2x128xf32>
    %cst_41 = arith.constant 1.000000e+00 : f32
    %97 = vector.broadcast %cst_41 : f32 to vector<2x128xf32>
    %98 = arith.addf %96, %97 : vector<2x128xf32>
    %cst_42 = arith.constant 5.000000e-01 : f32
    %99 = vector.broadcast %cst_42 : f32 to vector<2x128xf32>
    %100 = arith.mulf %99, %98 : vector<2x128xf32>
    %101 = vector.extract_strided_slice %84 {offsets = [0, 256], sizes = [2, 128], strides = [1, 1]} : vector<2x512xf32> to vector<2x128xf32>
    %102 = math.tanh %101 : vector<2x128xf32>
    %103 = vector.extract_strided_slice %84 {offsets = [0, 384], sizes = [2, 128], strides = [1, 1]} : vector<2x512xf32> to vector<2x128xf32>
    %cst_43 = arith.constant 5.000000e-01 : f32
    %104 = vector.broadcast %cst_43 : f32 to vector<2x128xf32>
    %105 = arith.mulf %104, %103 : vector<2x128xf32>
    %106 = math.tanh %105 : vector<2x128xf32>
    %cst_44 = arith.constant 1.000000e+00 : f32
    %107 = vector.broadcast %cst_44 : f32 to vector<2x128xf32>
    %108 = arith.addf %106, %107 : vector<2x128xf32>
    %cst_45 = arith.constant 5.000000e-01 : f32
    %109 = vector.broadcast %cst_45 : f32 to vector<2x128xf32>
    %110 = arith.mulf %109, %108 : vector<2x128xf32>
    %111 = arith.mulf %100, %78 : vector<2x128xf32>
    %112 = arith.mulf %92, %102 : vector<2x128xf32>
    %113 = arith.addf %111, %112 : vector<2x128xf32>
    %114 = math.tanh %113 : vector<2x128xf32>
    %115 = arith.mulf %110, %114 : vector<2x128xf32>
    %116 = vector.extract_strided_slice %8 {offsets = [6, 0], sizes = [2, 512], strides = [1, 1]} : vector<16x512xf32> to vector<2x512xf32>
    %c0_46 = arith.constant 0 : index
    %c0_47 = arith.constant 0 : index
    %117 = vector.load %arg3[%c0_46, %c0_47] : memref<128x512xf32, #tpu.memory_space<vmem>>, vector<128x512xf32>
    %cst_48 = arith.constant dense<0.000000e+00> : vector<2x512xf32>
    %118 = tpu.matmul %115, %117, %cst_48 {dimension_numbers = #tpu.dot_dimension_numbers<[1], [0], [0], [1], [0, 0, 1, 1], [], []>} : vector<2x128xf32>, vector<128x512xf32>, vector<2x512xf32> -> vector<2x512xf32>
    %119 = arith.addf %116, %118 : vector<2x512xf32>
    %120 = vector.extract_strided_slice %119 {offsets = [0, 0], sizes = [2, 128], strides = [1, 1]} : vector<2x512xf32> to vector<2x128xf32>
    %cst_49 = arith.constant 5.000000e-01 : f32
    %121 = vector.broadcast %cst_49 : f32 to vector<2x128xf32>
    %122 = arith.mulf %121, %120 : vector<2x128xf32>
    %123 = math.tanh %122 : vector<2x128xf32>
    %cst_50 = arith.constant 1.000000e+00 : f32
    %124 = vector.broadcast %cst_50 : f32 to vector<2x128xf32>
    %125 = arith.addf %123, %124 : vector<2x128xf32>
    %cst_51 = arith.constant 5.000000e-01 : f32
    %126 = vector.broadcast %cst_51 : f32 to vector<2x128xf32>
    %127 = arith.mulf %126, %125 : vector<2x128xf32>
    %128 = vector.extract_strided_slice %119 {offsets = [0, 128], sizes = [2, 128], strides = [1, 1]} : vector<2x512xf32> to vector<2x128xf32>
    %cst_52 = arith.constant 5.000000e-01 : f32
    %129 = vector.broadcast %cst_52 : f32 to vector<2x128xf32>
    %130 = arith.mulf %129, %128 : vector<2x128xf32>
    %131 = math.tanh %130 : vector<2x128xf32>
    %cst_53 = arith.constant 1.000000e+00 : f32
    %132 = vector.broadcast %cst_53 : f32 to vector<2x128xf32>
    %133 = arith.addf %131, %132 : vector<2x128xf32>
    %cst_54 = arith.constant 5.000000e-01 : f32
    %134 = vector.broadcast %cst_54 : f32 to vector<2x128xf32>
    %135 = arith.mulf %134, %133 : vector<2x128xf32>
    %136 = vector.extract_strided_slice %119 {offsets = [0, 256], sizes = [2, 128], strides = [1, 1]} : vector<2x512xf32> to vector<2x128xf32>
    %137 = math.tanh %136 : vector<2x128xf32>
    %138 = vector.extract_strided_slice %119 {offsets = [0, 384], sizes = [2, 128], strides = [1, 1]} : vector<2x512xf32> to vector<2x128xf32>
    %cst_55 = arith.constant 5.000000e-01 : f32
    %139 = vector.broadcast %cst_55 : f32 to vector<2x128xf32>
    %140 = arith.mulf %139, %138 : vector<2x128xf32>
    %141 = math.tanh %140 : vector<2x128xf32>
    %cst_56 = arith.constant 1.000000e+00 : f32
    %142 = vector.broadcast %cst_56 : f32 to vector<2x128xf32>
    %143 = arith.addf %141, %142 : vector<2x128xf32>
    %cst_57 = arith.constant 5.000000e-01 : f32
    %144 = vector.broadcast %cst_57 : f32 to vector<2x128xf32>
    %145 = arith.mulf %144, %143 : vector<2x128xf32>
    %146 = arith.mulf %135, %113 : vector<2x128xf32>
    %147 = arith.mulf %127, %137 : vector<2x128xf32>
    %148 = arith.addf %146, %147 : vector<2x128xf32>
    %149 = math.tanh %148 : vector<2x128xf32>
    %150 = arith.mulf %145, %149 : vector<2x128xf32>
    %151 = vector.extract_strided_slice %8 {offsets = [8, 0], sizes = [2, 512], strides = [1, 1]} : vector<16x512xf32> to vector<2x512xf32>
    %c0_58 = arith.constant 0 : index
    %c0_59 = arith.constant 0 : index
    %152 = vector.load %arg3[%c0_58, %c0_59] : memref<128x512xf32, #tpu.memory_space<vmem>>, vector<128x512xf32>
    %cst_60 = arith.constant dense<0.000000e+00> : vector<2x512xf32>
    %153 = tpu.matmul %150, %152, %cst_60 {dimension_numbers = #tpu.dot_dimension_numbers<[1], [0], [0], [1], [0, 0, 1, 1], [], []>} : vector<2x128xf32>, vector<128x512xf32>, vector<2x512xf32> -> vector<2x512xf32>
    %154 = arith.addf %151, %153 : vector<2x512xf32>
    %155 = vector.extract_strided_slice %154 {offsets = [0, 0], sizes = [2, 128], strides = [1, 1]} : vector<2x512xf32> to vector<2x128xf32>
    %cst_61 = arith.constant 5.000000e-01 : f32
    %156 = vector.broadcast %cst_61 : f32 to vector<2x128xf32>
    %157 = arith.mulf %156, %155 : vector<2x128xf32>
    %158 = math.tanh %157 : vector<2x128xf32>
    %cst_62 = arith.constant 1.000000e+00 : f32
    %159 = vector.broadcast %cst_62 : f32 to vector<2x128xf32>
    %160 = arith.addf %158, %159 : vector<2x128xf32>
    %cst_63 = arith.constant 5.000000e-01 : f32
    %161 = vector.broadcast %cst_63 : f32 to vector<2x128xf32>
    %162 = arith.mulf %161, %160 : vector<2x128xf32>
    %163 = vector.extract_strided_slice %154 {offsets = [0, 128], sizes = [2, 128], strides = [1, 1]} : vector<2x512xf32> to vector<2x128xf32>
    %cst_64 = arith.constant 5.000000e-01 : f32
    %164 = vector.broadcast %cst_64 : f32 to vector<2x128xf32>
    %165 = arith.mulf %164, %163 : vector<2x128xf32>
    %166 = math.tanh %165 : vector<2x128xf32>
    %cst_65 = arith.constant 1.000000e+00 : f32
    %167 = vector.broadcast %cst_65 : f32 to vector<2x128xf32>
    %168 = arith.addf %166, %167 : vector<2x128xf32>
    %cst_66 = arith.constant 5.000000e-01 : f32
    %169 = vector.broadcast %cst_66 : f32 to vector<2x128xf32>
    %170 = arith.mulf %169, %168 : vector<2x128xf32>
    %171 = vector.extract_strided_slice %154 {offsets = [0, 256], sizes = [2, 128], strides = [1, 1]} : vector<2x512xf32> to vector<2x128xf32>
    %172 = math.tanh %171 : vector<2x128xf32>
    %173 = vector.extract_strided_slice %154 {offsets = [0, 384], sizes = [2, 128], strides = [1, 1]} : vector<2x512xf32> to vector<2x128xf32>
    %cst_67 = arith.constant 5.000000e-01 : f32
    %174 = vector.broadcast %cst_67 : f32 to vector<2x128xf32>
    %175 = arith.mulf %174, %173 : vector<2x128xf32>
    %176 = math.tanh %175 : vector<2x128xf32>
    %cst_68 = arith.constant 1.000000e+00 : f32
    %177 = vector.broadcast %cst_68 : f32 to vector<2x128xf32>
    %178 = arith.addf %176, %177 : vector<2x128xf32>
    %cst_69 = arith.constant 5.000000e-01 : f32
    %179 = vector.broadcast %cst_69 : f32 to vector<2x128xf32>
    %180 = arith.mulf %179, %178 : vector<2x128xf32>
    %181 = arith.mulf %170, %148 : vector<2x128xf32>
    %182 = arith.mulf %162, %172 : vector<2x128xf32>
    %183 = arith.addf %181, %182 : vector<2x128xf32>
    %184 = math.tanh %183 : vector<2x128xf32>
    %185 = arith.mulf %180, %184 : vector<2x128xf32>
    %186 = vector.extract_strided_slice %8 {offsets = [10, 0], sizes = [2, 512], strides = [1, 1]} : vector<16x512xf32> to vector<2x512xf32>
    %c0_70 = arith.constant 0 : index
    %c0_71 = arith.constant 0 : index
    %187 = vector.load %arg3[%c0_70, %c0_71] : memref<128x512xf32, #tpu.memory_space<vmem>>, vector<128x512xf32>
    %cst_72 = arith.constant dense<0.000000e+00> : vector<2x512xf32>
    %188 = tpu.matmul %185, %187, %cst_72 {dimension_numbers = #tpu.dot_dimension_numbers<[1], [0], [0], [1], [0, 0, 1, 1], [], []>} : vector<2x128xf32>, vector<128x512xf32>, vector<2x512xf32> -> vector<2x512xf32>
    %189 = arith.addf %186, %188 : vector<2x512xf32>
    %190 = vector.extract_strided_slice %189 {offsets = [0, 0], sizes = [2, 128], strides = [1, 1]} : vector<2x512xf32> to vector<2x128xf32>
    %cst_73 = arith.constant 5.000000e-01 : f32
    %191 = vector.broadcast %cst_73 : f32 to vector<2x128xf32>
    %192 = arith.mulf %191, %190 : vector<2x128xf32>
    %193 = math.tanh %192 : vector<2x128xf32>
    %cst_74 = arith.constant 1.000000e+00 : f32
    %194 = vector.broadcast %cst_74 : f32 to vector<2x128xf32>
    %195 = arith.addf %193, %194 : vector<2x128xf32>
    %cst_75 = arith.constant 5.000000e-01 : f32
    %196 = vector.broadcast %cst_75 : f32 to vector<2x128xf32>
    %197 = arith.mulf %196, %195 : vector<2x128xf32>
    %198 = vector.extract_strided_slice %189 {offsets = [0, 128], sizes = [2, 128], strides = [1, 1]} : vector<2x512xf32> to vector<2x128xf32>
    %cst_76 = arith.constant 5.000000e-01 : f32
    %199 = vector.broadcast %cst_76 : f32 to vector<2x128xf32>
    %200 = arith.mulf %199, %198 : vector<2x128xf32>
    %201 = math.tanh %200 : vector<2x128xf32>
    %cst_77 = arith.constant 1.000000e+00 : f32
    %202 = vector.broadcast %cst_77 : f32 to vector<2x128xf32>
    %203 = arith.addf %201, %202 : vector<2x128xf32>
    %cst_78 = arith.constant 5.000000e-01 : f32
    %204 = vector.broadcast %cst_78 : f32 to vector<2x128xf32>
    %205 = arith.mulf %204, %203 : vector<2x128xf32>
    %206 = vector.extract_strided_slice %189 {offsets = [0, 256], sizes = [2, 128], strides = [1, 1]} : vector<2x512xf32> to vector<2x128xf32>
    %207 = math.tanh %206 : vector<2x128xf32>
    %208 = vector.extract_strided_slice %189 {offsets = [0, 384], sizes = [2, 128], strides = [1, 1]} : vector<2x512xf32> to vector<2x128xf32>
    %cst_79 = arith.constant 5.000000e-01 : f32
    %209 = vector.broadcast %cst_79 : f32 to vector<2x128xf32>
    %210 = arith.mulf %209, %208 : vector<2x128xf32>
    %211 = math.tanh %210 : vector<2x128xf32>
    %cst_80 = arith.constant 1.000000e+00 : f32
    %212 = vector.broadcast %cst_80 : f32 to vector<2x128xf32>
    %213 = arith.addf %211, %212 : vector<2x128xf32>
    %cst_81 = arith.constant 5.000000e-01 : f32
    %214 = vector.broadcast %cst_81 : f32 to vector<2x128xf32>
    %215 = arith.mulf %214, %213 : vector<2x128xf32>
    %216 = arith.mulf %205, %183 : vector<2x128xf32>
    %217 = arith.mulf %197, %207 : vector<2x128xf32>
    %218 = arith.addf %216, %217 : vector<2x128xf32>
    %219 = math.tanh %218 : vector<2x128xf32>
    %220 = arith.mulf %215, %219 : vector<2x128xf32>
    %221 = vector.extract_strided_slice %8 {offsets = [12, 0], sizes = [2, 512], strides = [1, 1]} : vector<16x512xf32> to vector<2x512xf32>
    %c0_82 = arith.constant 0 : index
    %c0_83 = arith.constant 0 : index
    %222 = vector.load %arg3[%c0_82, %c0_83] : memref<128x512xf32, #tpu.memory_space<vmem>>, vector<128x512xf32>
    %cst_84 = arith.constant dense<0.000000e+00> : vector<2x512xf32>
    %223 = tpu.matmul %220, %222, %cst_84 {dimension_numbers = #tpu.dot_dimension_numbers<[1], [0], [0], [1], [0, 0, 1, 1], [], []>} : vector<2x128xf32>, vector<128x512xf32>, vector<2x512xf32> -> vector<2x512xf32>
    %224 = arith.addf %221, %223 : vector<2x512xf32>
    %225 = vector.extract_strided_slice %224 {offsets = [0, 0], sizes = [2, 128], strides = [1, 1]} : vector<2x512xf32> to vector<2x128xf32>
    %cst_85 = arith.constant 5.000000e-01 : f32
    %226 = vector.broadcast %cst_85 : f32 to vector<2x128xf32>
    %227 = arith.mulf %226, %225 : vector<2x128xf32>
    %228 = math.tanh %227 : vector<2x128xf32>
    %cst_86 = arith.constant 1.000000e+00 : f32
    %229 = vector.broadcast %cst_86 : f32 to vector<2x128xf32>
    %230 = arith.addf %228, %229 : vector<2x128xf32>
    %cst_87 = arith.constant 5.000000e-01 : f32
    %231 = vector.broadcast %cst_87 : f32 to vector<2x128xf32>
    %232 = arith.mulf %231, %230 : vector<2x128xf32>
    %233 = vector.extract_strided_slice %224 {offsets = [0, 128], sizes = [2, 128], strides = [1, 1]} : vector<2x512xf32> to vector<2x128xf32>
    %cst_88 = arith.constant 5.000000e-01 : f32
    %234 = vector.broadcast %cst_88 : f32 to vector<2x128xf32>
    %235 = arith.mulf %234, %233 : vector<2x128xf32>
    %236 = math.tanh %235 : vector<2x128xf32>
    %cst_89 = arith.constant 1.000000e+00 : f32
    %237 = vector.broadcast %cst_89 : f32 to vector<2x128xf32>
    %238 = arith.addf %236, %237 : vector<2x128xf32>
    %cst_90 = arith.constant 5.000000e-01 : f32
    %239 = vector.broadcast %cst_90 : f32 to vector<2x128xf32>
    %240 = arith.mulf %239, %238 : vector<2x128xf32>
    %241 = vector.extract_strided_slice %224 {offsets = [0, 256], sizes = [2, 128], strides = [1, 1]} : vector<2x512xf32> to vector<2x128xf32>
    %242 = math.tanh %241 : vector<2x128xf32>
    %243 = vector.extract_strided_slice %224 {offsets = [0, 384], sizes = [2, 128], strides = [1, 1]} : vector<2x512xf32> to vector<2x128xf32>
    %cst_91 = arith.constant 5.000000e-01 : f32
    %244 = vector.broadcast %cst_91 : f32 to vector<2x128xf32>
    %245 = arith.mulf %244, %243 : vector<2x128xf32>
    %246 = math.tanh %245 : vector<2x128xf32>
    %cst_92 = arith.constant 1.000000e+00 : f32
    %247 = vector.broadcast %cst_92 : f32 to vector<2x128xf32>
    %248 = arith.addf %246, %247 : vector<2x128xf32>
    %cst_93 = arith.constant 5.000000e-01 : f32
    %249 = vector.broadcast %cst_93 : f32 to vector<2x128xf32>
    %250 = arith.mulf %249, %248 : vector<2x128xf32>
    %251 = arith.mulf %240, %218 : vector<2x128xf32>
    %252 = arith.mulf %232, %242 : vector<2x128xf32>
    %253 = arith.addf %251, %252 : vector<2x128xf32>
    %254 = math.tanh %253 : vector<2x128xf32>
    %255 = arith.mulf %250, %254 : vector<2x128xf32>
    %256 = vector.extract_strided_slice %8 {offsets = [14, 0], sizes = [2, 512], strides = [1, 1]} : vector<16x512xf32> to vector<2x512xf32>
    %c0_94 = arith.constant 0 : index
    %c0_95 = arith.constant 0 : index
    %257 = vector.load %arg3[%c0_94, %c0_95] : memref<128x512xf32, #tpu.memory_space<vmem>>, vector<128x512xf32>
    %cst_96 = arith.constant dense<0.000000e+00> : vector<2x512xf32>
    %258 = tpu.matmul %255, %257, %cst_96 {dimension_numbers = #tpu.dot_dimension_numbers<[1], [0], [0], [1], [0, 0, 1, 1], [], []>} : vector<2x128xf32>, vector<128x512xf32>, vector<2x512xf32> -> vector<2x512xf32>
    %259 = arith.addf %256, %258 : vector<2x512xf32>
    %260 = vector.extract_strided_slice %259 {offsets = [0, 0], sizes = [2, 128], strides = [1, 1]} : vector<2x512xf32> to vector<2x128xf32>
    %cst_97 = arith.constant 5.000000e-01 : f32
    %261 = vector.broadcast %cst_97 : f32 to vector<2x128xf32>
    %262 = arith.mulf %261, %260 : vector<2x128xf32>
    %263 = math.tanh %262 : vector<2x128xf32>
    %cst_98 = arith.constant 1.000000e+00 : f32
    %264 = vector.broadcast %cst_98 : f32 to vector<2x128xf32>
    %265 = arith.addf %263, %264 : vector<2x128xf32>
    %cst_99 = arith.constant 5.000000e-01 : f32
    %266 = vector.broadcast %cst_99 : f32 to vector<2x128xf32>
    %267 = arith.mulf %266, %265 : vector<2x128xf32>
    %268 = vector.extract_strided_slice %259 {offsets = [0, 128], sizes = [2, 128], strides = [1, 1]} : vector<2x512xf32> to vector<2x128xf32>
    %cst_100 = arith.constant 5.000000e-01 : f32
    %269 = vector.broadcast %cst_100 : f32 to vector<2x128xf32>
    %270 = arith.mulf %269, %268 : vector<2x128xf32>
    %271 = math.tanh %270 : vector<2x128xf32>
    %cst_101 = arith.constant 1.000000e+00 : f32
    %272 = vector.broadcast %cst_101 : f32 to vector<2x128xf32>
    %273 = arith.addf %271, %272 : vector<2x128xf32>
    %cst_102 = arith.constant 5.000000e-01 : f32
    %274 = vector.broadcast %cst_102 : f32 to vector<2x128xf32>
    %275 = arith.mulf %274, %273 : vector<2x128xf32>
    %276 = vector.extract_strided_slice %259 {offsets = [0, 256], sizes = [2, 128], strides = [1, 1]} : vector<2x512xf32> to vector<2x128xf32>
    %277 = math.tanh %276 : vector<2x128xf32>
    %278 = vector.extract_strided_slice %259 {offsets = [0, 384], sizes = [2, 128], strides = [1, 1]} : vector<2x512xf32> to vector<2x128xf32>
    %cst_103 = arith.constant 5.000000e-01 : f32
    %279 = vector.broadcast %cst_103 : f32 to vector<2x128xf32>
    %280 = arith.mulf %279, %278 : vector<2x128xf32>
    %281 = math.tanh %280 : vector<2x128xf32>
    %cst_104 = arith.constant 1.000000e+00 : f32
    %282 = vector.broadcast %cst_104 : f32 to vector<2x128xf32>
    %283 = arith.addf %281, %282 : vector<2x128xf32>
    %cst_105 = arith.constant 5.000000e-01 : f32
    %284 = vector.broadcast %cst_105 : f32 to vector<2x128xf32>
    %285 = arith.mulf %284, %283 : vector<2x128xf32>
    %286 = arith.mulf %275, %253 : vector<2x128xf32>
    %287 = arith.mulf %267, %277 : vector<2x128xf32>
    %288 = arith.addf %286, %287 : vector<2x128xf32>
    %289 = math.tanh %288 : vector<2x128xf32>
    %290 = arith.mulf %285, %289 : vector<2x128xf32>
    %c0_106 = arith.constant 0 : index
    %c0_107 = arith.constant 0 : index
    %291 = vector.load %arg6[%c0_106, %c0_107] : memref<2x128xf32, #tpu.memory_space<vmem>>, vector<2x128xf32>
    tpu.vector_store %arg6[%c0_106, %c0_107], %290 {strides = array<i32>} : memref<2x128xf32, #tpu.memory_space<vmem>>, vector<2x128xf32>,
    %c0_108 = arith.constant 0 : index
    %c0_109 = arith.constant 0 : index
    %292 = vector.load %arg7[%c0_108, %c0_109] : memref<2x128xf32, #tpu.memory_space<vmem>>, vector<2x128xf32>
    tpu.vector_store %arg7[%c0_108, %c0_109], %288 {strides = array<i32>} : memref<2x128xf32, #tpu.memory_space<vmem>>, vector<2x128xf32>,
    %c0_i32_110 = arith.constant 0 : i32
    %293 = arith.cmpi eq, %arg0, %c0_i32_110 : i32
    %294 = arith.extui %293 : i1 to i32
    %c0_i32_111 = arith.constant 0 : i32
    %295 = arith.cmpi ne, %294, %c0_i32_111 : i32
    scf.if %295 {
      %c0_112 = arith.constant 0 : index
      %c0_113 = arith.constant 0 : index
      %296 = vector.load %arg5[%c0_112, %c0_113] : memref<2x128xf32, #tpu.memory_space<vmem>>, vector<2x128xf32>
      tpu.vector_store %arg5[%c0_112, %c0_113], %290 {strides = array<i32>} : memref<2x128xf32, #tpu.memory_space<vmem>>, vector<2x128xf32>,
    } else {
    }
    return
  }
  func.func @transform_0(%arg0: i32) -> (i32, i32) {
    %c0_i32 = arith.constant 0 : i32
    %c0_i32_0 = arith.constant 0 : i32
    return %arg0, %c0_i32 : i32, i32
  }
  func.func @transform_1(%arg0: i32) -> (i32, i32) {
    %c0_i32 = arith.constant 0 : i32
    %c0_i32_0 = arith.constant 0 : i32
    %c0_i32_1 = arith.constant 0 : i32
    return %c0_i32, %c0_i32_0 : i32, i32
  }
  func.func @transform_2(%arg0: i32) -> (i32, i32) {
    %c0_i32 = arith.constant 0 : i32
    %c0_i32_0 = arith.constant 0 : i32
    %c0_i32_1 = arith.constant 0 : i32
    return %c0_i32, %c0_i32_0 : i32, i32
  }
  func.func @transform_3(%arg0: i32) -> (i32, i32) {
    %c0_i32 = arith.constant 0 : i32
    %c0_i32_0 = arith.constant 0 : i32
    %c0_i32_1 = arith.constant 0 : i32
    return %c0_i32, %c0_i32_0 : i32, i32
  }
  func.func @transform_4(%arg0: i32) -> (i32, i32) {
    %c0_i32 = arith.constant 0 : i32
    %c0_i32_0 = arith.constant 0 : i32
    %c0_i32_1 = arith.constant 0 : i32
    return %c0_i32, %c0_i32_0 : i32, i32
  }
}

</mosaic_0001>

<llo_original>
// kernel: tpu_custom_call.1
$region0: #{tpu_custom_call.1}
  #allocation0 [shape = 'u32[]', space=smem, size = 0x4, offset = 0x4, fixed_abs, tag = 'smem constant byte address 0x4 - core index']
  #allocation1 [shape = 'u32[144,128]{1,0:T(1,128)}', space=vmem, size = 0x12000, scoped, tag = 'internal scratch']
  #allocation2 [shape = 'f32[2,128]{1,0:T(2,128)}', space=vmem, size = 0x400, scoped, tag = 'scratch operand']
  #allocation3 [shape = 'f32[2,128]{1,0:T(2,128)}', space=vmem, size = 0x400, scoped, tag = 'scratch operand']
  %s0 = inlined_call_operand.hbm [shape: f32[16,256], index: 0, kind: input, shape index: {}]
  %s1 = inlined_call_operand.hbm [shape: f32[256,512], index: 1, kind: input, shape index: {}]
  %s2 = inlined_call_operand.hbm [shape: f32[128,512], index: 2, kind: input, shape index: {}]
  %s3 = inlined_call_operand.vmem [shape: f32[1,512], index: 3, kind: input, shape index: {}]
  %s4 = inlined_call_operand.hbm [shape: f32[2,128], index: 4, kind: output, shape index: {}]
  %s5 = sld [smem:[#allocation0]]
  $region46: #{tpu_custom_call.1} parent=0
    _
  %s7 = ssub.s32 1, %s5
  %s8 = scalar_select 0, %s7, %s5
  $region1: #{tpu_custom_call.1} parent=0
    #allocation4 [shape = 'u8[16384]{0}', space=vmem, size = 0x4000, scoped, tag = 'input window, operand 0, single buffered']
    #allocation5 [shape = 's32[1]{0}', space=sflag, size = 0x4, scoped, tag = 'scoped memory for tpu_custom_call.1']
    #allocation6 [shape = 's32[1]{0}', space=sflag, size = 0x4, scoped, tag = 'scoped memory for tpu_custom_call.1']
    #allocation7 [shape = 'u8[524288]{0}', space=vmem, size = 0x80000, scoped, tag = 'input window, operand 1, single buffered']
    #allocation8 [shape = 's32[1]{0}', space=sflag, size = 0x4, scoped, tag = 'scoped memory for tpu_custom_call.1']
    #allocation9 [shape = 'u8[262144]{0}', space=vmem, size = 0x40000, scoped, tag = 'input window, operand 2, single buffered']
    #allocation10 [shape = 'u8[1024]{0}', space=vmem, size = 0x400, scoped, tag = 'output window, operand 0, single buffered']
    %9 = vsyncpa [#allocation5], 0
    %10 = vsyncpa [#allocation8], 0
    %11 = vsyncpa [#allocation6], 0
    // Predicated region
    $region2: #{tpu_custom_call.1} parent=1 // pred_check
      _
    $region3: #{tpu_custom_call.1} parent=1 // pred_check_branch
      %13 = sbr.rel (0) target = $region5
    $region4: #{tpu_custom_call.1} parent=1 // pred_region
      %s15 = ssub.s32 512, 512
      %16 = vsyncadd [#allocation5], %s15
      %s17 = sshll.u32 [#allocation4], 4
      %s18 = int_to_ptr.vmem [resolvable:$true] %s17
      %23 = dma.hbm_to_vmem [thread:$0]  %s0, 512, %s18, [#allocation5], 256, 256, 16
    $region5: #{tpu_custom_call.1} parent=1 // pred_fallthru
      _
    // Predicated region
    $region6: #{tpu_custom_call.1} parent=1 // pred_check
      _
    $region7: #{tpu_custom_call.1} parent=1 // pred_check_branch
      %25 = sbr.rel (0) target = $region9
    $region8: #{tpu_custom_call.1} parent=1 // pred_region
      %s27 = ssub.s32 16384, 16384
      %28 = vsyncadd [#allocation8], %s27
      %s29 = sshll.u32 [#allocation7], 4
      %s30 = int_to_ptr.vmem [resolvable:$true] %s29
      %35 = dma.hbm_to_vmem [thread:$0]  %s1, 16384, %s30, [#allocation8], 512, 512, 32
    $region9: #{tpu_custom_call.1} parent=1 // pred_fallthru
      _
    // Predicated region
    $region10: #{tpu_custom_call.1} parent=1 // pred_check
      _
    $region11: #{tpu_custom_call.1} parent=1 // pred_check_branch
      %37 = sbr.rel (0) target = $region13
    $region12: #{tpu_custom_call.1} parent=1 // pred_region
      %s39 = ssub.s32 8192, 8192
      %40 = vsyncadd [#allocation8], %s39
      %s41 = sshll.u32 [#allocation9], 4
      %s42 = int_to_ptr.vmem [resolvable:$true] %s41
      %47 = dma.hbm_to_vmem [thread:$0]  %s2, 8192, %s42, [#allocation8], 512, 512, 32
    $region13: #{tpu_custom_call.1} parent=1 // pred_fallthru
      _
    // Predicated region
    $region14: #{tpu_custom_call.1} parent=1 // pred_check
      _
    $region15: #{tpu_custom_call.1} parent=1 // pred_check_branch
      %49 = sbr.rel (0) target = $region17
    $region16: #{tpu_custom_call.1} parent=1 // pred_region
      _
    $region17: #{tpu_custom_call.1} parent=1 // pred_fallthru
      _
    // Predicated region
    $region18: #{tpu_custom_call.1} parent=1 // pred_check
      _
    $region19: #{tpu_custom_call.1} parent=1 // pred_check_branch
      %51 = sbr.rel (0) target = $region21
    $region20: #{tpu_custom_call.1} parent=1 // pred_region
      %52 = dma.done [#allocation5], 512
    $region21: #{tpu_custom_call.1} parent=1 // pred_fallthru
      _
    // Predicated region
    $region22: #{tpu_custom_call.1} parent=1 // pred_check
      _
    $region23: #{tpu_custom_call.1} parent=1 // pred_check_branch
      %54 = sbr.rel (0) target = $region25
    $region24: #{tpu_custom_call.1} parent=1 // pred_region
      %55 = dma.done [#allocation8], 16384
    $region25: #{tpu_custom_call.1} parent=1 // pred_fallthru
      _
    // Predicated region
    $region26: #{tpu_custom_call.1} parent=1 // pred_check
      _
    $region27: #{tpu_custom_call.1} parent=1 // pred_check_branch
      %57 = sbr.rel (0) target = $region29
    $region28: #{tpu_custom_call.1} parent=1 // pred_region
      %58 = dma.done [#allocation8], 8192
    $region29: #{tpu_custom_call.1} parent=1 // pred_fallthru
      _
    %p59 = scmp.eq.s32.totalorder 0, 0
    // Predicated region
    $region30: #{tpu_custom_call.1} parent=1 // pred_check
      %p60 = pneg %p59
    $region31: #{tpu_custom_call.1} parent=1 // pred_check_branch
      %62 = sbr.rel (%p60) target = $region33
    $region32: #{tpu_custom_call.1} parent=1 // pred_region
      %63 = vst [vmem:[#allocation2] sm:$0x3] 0.0
      %64 = vst [vmem:[#allocation3] sm:$0x3] 0.0
    $region33: #{tpu_custom_call.1} parent=1 // pred_fallthru
      _
    %v65 = vld [vmem:[#allocation4] sm:$0xff]
    %v66 = vld [vmem:[#allocation4 + $0x8] sm:$0xff]
    %v67 = vld [vmem:[#allocation4 + $0x10] sm:$0xff]
    %v68 = vld [vmem:[#allocation4 + $0x18] sm:$0xff]
    %v69 = vld [vmem:[#allocation7] sm:$0xff]
    %v70 = vld [vmem:[#allocation7 + $0x8] sm:$0xff]
    %v71 = vld [vmem:[#allocation7 + $0x10] sm:$0xff]
    %v72 = vld [vmem:[#allocation7 + $0x18] sm:$0xff]
    %v73 = vld [vmem:[#allocation7 + $0x20] sm:$0xff]
    %v74 = vld [vmem:[#allocation7 + $0x28] sm:$0xff]
    %v75 = vld [vmem:[#allocation7 + $0x30] sm:$0xff]
    %v76 = vld [vmem:[#allocation7 + $0x38] sm:$0xff]
    %v77 = vld [vmem:[#allocation7 + $0x40] sm:$0xff]
    %v78 = vld [vmem:[#allocation7 + $0x48] sm:$0xff]
    %v79 = vld [vmem:[#allocation7 + $0x50] sm:$0xff]
    %v80 = vld [vmem:[#allocation7 + $0x58] sm:$0xff]
    %v81 = vld [vmem:[#allocation7 + $0x60] sm:$0xff]
    %v82 = vld [vmem:[#allocation7 + $0x68] sm:$0xff]
    %v83 = vld [vmem:[#allocation7 + $0x70] sm:$0xff]
    %v84 = vld [vmem:[#allocation7 + $0x78] sm:$0xff]
    %v85 = vld [vmem:[#allocation7 + $0x80] sm:$0xff]
    %v86 = vld [vmem:[#allocation7 + $0x88] sm:$0xff]
    %v87 = vld [vmem:[#allocation7 + $0x90] sm:$0xff]
    %v88 = vld [vmem:[#allocation7 + $0x98] sm:$0xff]
    %v89 = vld [vmem:[#allocation7 + $0xa0] sm:$0xff]
    %v90 = vld [vmem:[#allocation7 + $0xa8] sm:$0xff]
    %v91 = vld [vmem:[#allocation7 + $0xb0] sm:$0xff]
    %v92 = vld [vmem:[#allocation7 + $0xb8] sm:$0xff]
    %v93 = vld [vmem:[#allocation7 + $0xc0] sm:$0xff]
    %v94 = vld [vmem:[#allocation7 + $0xc8] sm:$0xff]
    %v95 = vld [vmem:[#allocation7 + $0xd0] sm:$0xff]
    %v96 = vld [vmem:[#allocation7 + $0xd8] sm:$0xff]
    %v97 = vld [vmem:[#allocation7 + $0xe0] sm:$0xff]
    %v98 = vld [vmem:[#allocation7 + $0xe8] sm:$0xff]
    %v99 = vld [vmem:[#allocation7 + $0xf0] sm:$0xff]
    %v100 = vld [vmem:[#allocation7 + $0xf8] sm:$0xff]
    %v101 = vld [vmem:[#allocation7 + $0x100] sm:$0xff]
    %v102 = vld [vmem:[#allocation7 + $0x108] sm:$0xff]
    %v103 = vld [vmem:[#allocation7 + $0x110] sm:$0xff]
    %v104 = vld [vmem:[#allocation7 + $0x118] sm:$0xff]
    %v105 = vld [vmem:[#allocation7 + $0x120] sm:$0xff]
    %v106 = vld [vmem:[#allocation7 + $0x128] sm:$0xff]
    %v107 = vld [vmem:[#allocation7 + $0x130] sm:$0xff]
    %v108 = vld [vmem:[#allocation7 + $0x138] sm:$0xff]
    %v109 = vld [vmem:[#allocation7 + $0x140] sm:$0xff]
    %v110 = vld [vmem:[#allocation7 + $0x148] sm:$0xff]
    %v111 = vld [vmem:[#allocation7 + $0x150] sm:$0xff]
    %v112 = vld [vmem:[#allocation7 + $0x158] sm:$0xff]
    %v113 = vld [vmem:[#allocation7 + $0x160] sm:$0xff]
    %v114 = vld [vmem:[#allocation7 + $0x168] sm:$0xff]
    %v115 = vld [vmem:[#allocation7 + $0x170] sm:$0xff]
    %v116 = vld [vmem:[#allocation7 + $0x178] sm:$0xff]
    %v117 = vld [vmem:[#allocation7 + $0x180] sm:$0xff]
    %v118 = vld [vmem:[#allocation7 + $0x188] sm:$0xff]
    %v119 = vld [vmem:[#allocation7 + $0x190] sm:$0xff]
    %v120 = vld [vmem:[#allocation7 + $0x198] sm:$0xff]
    %v121 = vld [vmem:[#allocation7 + $0x1a0] sm:$0xff]
    %v122 = vld [vmem:[#allocation7 + $0x1a8] sm:$0xff]
    %v123 = vld [vmem:[#allocation7 + $0x1b0] sm:$0xff]
    %v124 = vld [vmem:[#allocation7 + $0x1b8] sm:$0xff]
    %v125 = vld [vmem:[#allocation7 + $0x1c0] sm:$0xff]
    %v126 = vld [vmem:[#allocation7 + $0x1c8] sm:$0xff]
    %v127 = vld [vmem:[#allocation7 + $0x1d0] sm:$0xff]
    %v128 = vld [vmem:[#allocation7 + $0x1d8] sm:$0xff]
    %v129 = vld [vmem:[#allocation7 + $0x1e0] sm:$0xff]
    %v130 = vld [vmem:[#allocation7 + $0x1e8] sm:$0xff]
    %v131 = vld [vmem:[#allocation7 + $0x1f0] sm:$0xff]
    %v132 = vld [vmem:[#allocation7 + $0x1f8] sm:$0xff]
    %v133 = vld [vmem:[#allocation7 + $0x200] sm:$0xff]
    %v134 = vld [vmem:[#allocation7 + $0x208] sm:$0xff]
    %v135 = vld [vmem:[#allocation7 + $0x210] sm:$0xff]
    %v136 = vld [vmem:[#allocation7 + $0x218] sm:$0xff]
    %v137 = vld [vmem:[#allocation7 + $0x220] sm:$0xff]
    %v138 = vld [vmem:[#allocation7 + $0x228] sm:$0xff]
    %v139 = vld [vmem:[#allocation7 + $0x230] sm:$0xff]
    %v140 = vld [vmem:[#allocation7 + $0x238] sm:$0xff]
    %v141 = vld [vmem:[#allocation7 + $0x240] sm:$0xff]
    %v142 = vld [vmem:[#allocation7 + $0x248] sm:$0xff]
    %v143 = vld [vmem:[#allocation7 + $0x250] sm:$0xff]
    %v144 = vld [vmem:[#allocation7 + $0x258] sm:$0xff]
    %v145 = vld [vmem:[#allocation7 + $0x260] sm:$0xff]
    %v146 = vld [vmem:[#allocation7 + $0x268] sm:$0xff]
    %v147 = vld [vmem:[#allocation7 + $0x270] sm:$0xff]
    %v148 = vld [vmem:[#allocation7 + $0x278] sm:$0xff]
    %v149 = vld [vmem:[#allocation7 + $0x280] sm:$0xff]
    %v150 = vld [vmem:[#allocation7 + $0x288] sm:$0xff]
    %v151 = vld [vmem:[#allocation7 + $0x290] sm:$0xff]
    %v152 = vld [vmem:[#allocation7 + $0x298] sm:$0xff]
    %v153 = vld [vmem:[#allocation7 + $0x2a0] sm:$0xff]
    %v154 = vld [vmem:[#allocation7 + $0x2a8] sm:$0xff]
    %v155 = vld [vmem:[#allocation7 + $0x2b0] sm:$0xff]
    %v156 = vld [vmem:[#allocation7 + $0x2b8] sm:$0xff]
    %v157 = vld [vmem:[#allocation7 + $0x2c0] sm:$0xff]
    %v158 = vld [vmem:[#allocation7 + $0x2c8] sm:$0xff]
    %v159 = vld [vmem:[#allocation7 + $0x2d0] sm:$0xff]
    %v160 = vld [vmem:[#allocation7 + $0x2d8] sm:$0xff]
    %v161 = vld [vmem:[#allocation7 + $0x2e0] sm:$0xff]
    %v162 = vld [vmem:[#allocation7 + $0x2e8] sm:$0xff]
    %v163 = vld [vmem:[#allocation7 + $0x2f0] sm:$0xff]
    %v164 = vld [vmem:[#allocation7 + $0x2f8] sm:$0xff]
    %v165 = vld [vmem:[#allocation7 + $0x300] sm:$0xff]
    %v166 = vld [vmem:[#allocation7 + $0x308] sm:$0xff]
    %v167 = vld [vmem:[#allocation7 + $0x310] sm:$0xff]
    %v168 = vld [vmem:[#allocation7 + $0x318] sm:$0xff]
    %v169 = vld [vmem:[#allocation7 + $0x320] sm:$0xff]
    %v170 = vld [vmem:[#allocation7 + $0x328] sm:$0xff]
    %v171 = vld [vmem:[#allocation7 + $0x330] sm:$0xff]
    %v172 = vld [vmem:[#allocation7 + $0x338] sm:$0xff]
    %v173 = vld [vmem:[#allocation7 + $0x340] sm:$0xff]
    %v174 = vld [vmem:[#allocation7 + $0x348] sm:$0xff]
    %v175 = vld [vmem:[#allocation7 + $0x350] sm:$0xff]
    %v176 = vld [vmem:[#allocation7 + $0x358] sm:$0xff]
    %v177 = vld [vmem:[#allocation7 + $0x360] sm:$0xff]
    %v178 = vld [vmem:[#allocation7 + $0x368] sm:$0xff]
    %v179 = vld [vmem:[#allocation7 + $0x370] sm:$0xff]
    %v180 = vld [vmem:[#allocation7 + $0x378] sm:$0xff]
    %v181 = vld [vmem:[#allocation7 + $0x380] sm:$0xff]
    %v182 = vld [vmem:[#allocation7 + $0x388] sm:$0xff]
    %v183 = vld [vmem:[#allocation7 + $0x390] sm:$0xff]
    %v184 = vld [vmem:[#allocation7 + $0x398] sm:$0xff]
    %v185 = vld [vmem:[#allocation7 + $0x3a0] sm:$0xff]
    %v186 = vld [vmem:[#allocation7 + $0x3a8] sm:$0xff]
    %v187 = vld [vmem:[#allocation7 + $0x3b0] sm:$0xff]
    %v188 = vld [vmem:[#allocation7 + $0x3b8] sm:$0xff]
    %v189 = vld [vmem:[#allocation7 + $0x3c0] sm:$0xff]
    %v190 = vld [vmem:[#allocation7 + $0x3c8] sm:$0xff]
    %v191 = vld [vmem:[#allocation7 + $0x3d0] sm:$0xff]
    %v192 = vld [vmem:[#allocation7 + $0x3d8] sm:$0xff]
    %v193 = vld [vmem:[#allocation7 + $0x3e0] sm:$0xff]
    %v194 = vld [vmem:[#allocation7 + $0x3e8] sm:$0xff]
    %v195 = vld [vmem:[#allocation7 + $0x3f0] sm:$0xff]
    %v196 = vld [vmem:[#allocation7 + $0x3f8] sm:$0xff]
    %v197 = vld [vmem:[%s3] sm:$0xf]
    %v199 = vlaneseq
    %v200 = vshrl.u32 %v199, 7
    %v201 = vsub.s32 0, %v200
    %v202 = vrot.slane %v197, %v201
    %v203 = vlaneseq
    %v204 = vshrl.u32 %v203, 7
    %v205 = vsub.s32 1, %v204
    %v206 = vrot.slane %v197, %v205
    %v207 = vlaneseq
    %v208 = vshrl.u32 %v207, 7
    %v209 = vsub.s32 2, %v208
    %v210 = vrot.slane %v197, %v209
    %v211 = vlaneseq
    %v212 = vshrl.u32 %v211, 7
    %v213 = vsub.s32 3, %v212
    %v214 = vrot.slane %v197, %v213
    %219 = vmatprep.subr.mxu0 %v70
    %220 = vmatpush1.msra.mxu0 %v69
    %221 = vmatprep.subr.mxu0 %v74
    %222 = vmatpush1.msra.mxu0 %v73
    %223 = vmatprep.subr.mxu0 %v78
    %224 = vmatpush1.msra.mxu0 %v77
    %225 = vmatprep.subr.mxu0 %v82
    %226 = vmatpush1.msra.mxu0 %v81
    %227 = vmatprep.subr.mxu0 %v86
    %228 = vmatpush1.msra.mxu0 %v85
    %229 = vmatprep.subr.mxu0 %v90
    %230 = vmatpush1.msra.mxu0 %v89
    %231 = vmatprep.subr.mxu0 %v94
    %232 = vmatpush1.msra.mxu0 %v93
    %233 = vmatprep.subr.mxu0 %v98
    %234 = vmatpush1.msra.mxu0 %v97
    %235 = vmatprep.subr.mxu0 %v102
    %236 = vmatpush1.msra.mxu0 %v101
    %237 = vmatprep.subr.mxu0 %v106
    %238 = vmatpush1.msra.mxu0 %v105
    %239 = vmatprep.subr.mxu0 %v110
    %240 = vmatpush1.msra.mxu0 %v109
    %241 = vmatprep.subr.mxu0 %v114
    %242 = vmatpush1.msra.mxu0 %v113
    %243 = vmatprep.subr.mxu0 %v118
    %244 = vmatpush1.msra.mxu0 %v117
    %245 = vmatprep.subr.mxu0 %v122
    %246 = vmatpush1.msra.mxu0 %v121
    %247 = vmatprep.subr.mxu0 %v126
    %248 = vmatpush1.msra.mxu0 %v125
    %249 = vmatprep.subr.mxu0 %v130
    %250 = vmatpush1.msra.mxu0 %v129
    %251 = vmatprep.subr.mxu0 %v134
    %252 = vmatpush1.msra.mxu0 %v133
    %253 = vmatprep.subr.mxu0 %v138
    %254 = vmatpush1.msra.mxu0 %v137
    %255 = vmatprep.subr.mxu0 %v142
    %256 = vmatpush1.msra.mxu0 %v141
    %257 = vmatprep.subr.mxu0 %v146
    %258 = vmatpush1.msra.mxu0 %v145
    %259 = vmatprep.subr.mxu0 %v150
    %260 = vmatpush1.msra.mxu0 %v149
    %261 = vmatprep.subr.mxu0 %v154
    %262 = vmatpush1.msra.mxu0 %v153
    %263 = vmatprep.subr.mxu0 %v158
    %264 = vmatpush1.msra.mxu0 %v157
    %265 = vmatprep.subr.mxu0 %v162
    %266 = vmatpush1.msra.mxu0 %v161
    %267 = vmatprep.subr.mxu0 %v166
    %268 = vmatpush1.msra.mxu0 %v165
    %269 = vmatprep.subr.mxu0 %v170
    %270 = vmatpush1.msra.mxu0 %v169
    %271 = vmatprep.subr.mxu0 %v174
    %272 = vmatpush1.msra.mxu0 %v173
    %273 = vmatprep.subr.mxu0 %v178
    %274 = vmatpush1.msra.mxu0 %v177
    %275 = vmatprep.subr.mxu0 %v182
    %276 = vmatpush1.msra.mxu0 %v181
    %277 = vmatprep.subr.mxu0 %v186
    %278 = vmatpush1.msra.mxu0 %v185
    %279 = vmatprep.subr.mxu0 %v190
    %280 = vmatpush1.msra.mxu0 %v189
    %281 = vmatprep.subr.mxu0 %v194
    %282 = vmatpush1.msra.mxu0 %v193
    %283 = vmatprep.mubr.f32.mxu0 %v66
    %284 = vmatmul.mubr.f32.gmra.mrb[0].mxu0 %v65
    %v285 = vpop.f32.mrb[0].mxu0
    %v286 = vadd.f32 %v202, %v285
    %v287 = vpop.f32.mrb[0].mxu0
    %v288 = vadd.f32 %v206, %v287
    %289 = vmatprep.mubr.f32.mxu0 %v68
    %290 = vmatmul.mubr.f32.gmra.mrb[0].mxu0 %v67
    %v291 = vpop.f32.mrb[0].mxu0
    %v292 = vadd.f32 %v202, %v291
    %v293 = vpop.f32.mrb[0].mxu0
    %v294 = vadd.f32 %v206, %v293
    %295 = vdwg.mxu0
    %296 = vmatprep.subr.mxu0 %v72
    %297 = vmatpush1.msra.mxu0 %v71
    %298 = vmatprep.subr.mxu0 %v76
    %299 = vmatpush1.msra.mxu0 %v75
    %300 = vmatprep.subr.mxu0 %v80
    %301 = vmatpush1.msra.mxu0 %v79
    %302 = vmatprep.subr.mxu0 %v84
    %303 = vmatpush1.msra.mxu0 %v83
    %304 = vmatprep.subr.mxu0 %v88
    %305 = vmatpush1.msra.mxu0 %v87
    %306 = vmatprep.subr.mxu0 %v92
    %307 = vmatpush1.msra.mxu0 %v91
    %308 = vmatprep.subr.mxu0 %v96
    %309 = vmatpush1.msra.mxu0 %v95
    %310 = vmatprep.subr.mxu0 %v100
    %311 = vmatpush1.msra.mxu0 %v99
    %312 = vmatprep.subr.mxu0 %v104
    %313 = vmatpush1.msra.mxu0 %v103
    %314 = vmatprep.subr.mxu0 %v108
    %315 = vmatpush1.msra.mxu0 %v107
    %316 = vmatprep.subr.mxu0 %v112
    %317 = vmatpush1.msra.mxu0 %v111
    %318 = vmatprep.subr.mxu0 %v116
    %319 = vmatpush1.msra.mxu0 %v115
    %320 = vmatprep.subr.mxu0 %v120
    %321 = vmatpush1.msra.mxu0 %v119
    %322 = vmatprep.subr.mxu0 %v124
    %323 = vmatpush1.msra.mxu0 %v123
    %324 = vmatprep.subr.mxu0 %v128
    %325 = vmatpush1.msra.mxu0 %v127
    %326 = vmatprep.subr.mxu0 %v132
    %327 = vmatpush1.msra.mxu0 %v131
    %328 = vmatprep.subr.mxu0 %v136
    %329 = vmatpush1.msra.mxu0 %v135
    %330 = vmatprep.subr.mxu0 %v140
    %331 = vmatpush1.msra.mxu0 %v139
    %332 = vmatprep.subr.mxu0 %v144
    %333 = vmatpush1.msra.mxu0 %v143
    %334 = vmatprep.subr.mxu0 %v148
    %335 = vmatpush1.msra.mxu0 %v147
    %336 = vmatprep.subr.mxu0 %v152
    %337 = vmatpush1.msra.mxu0 %v151
    %338 = vmatprep.subr.mxu0 %v156
    %339 = vmatpush1.msra.mxu0 %v155
    %340 = vmatprep.subr.mxu0 %v160
    %341 = vmatpush1.msra.mxu0 %v159
    %342 = vmatprep.subr.mxu0 %v164
    %343 = vmatpush1.msra.mxu0 %v163
    %344 = vmatprep.subr.mxu0 %v168
    %345 = vmatpush1.msra.mxu0 %v167
    %346 = vmatprep.subr.mxu0 %v172
    %347 = vmatpush1.msra.mxu0 %v171
    %348 = vmatprep.subr.mxu0 %v176
    %349 = vmatpush1.msra.mxu0 %v175
    %350 = vmatprep.subr.mxu0 %v180
    %351 = vmatpush1.msra.mxu0 %v179
    %352 = vmatprep.subr.mxu0 %v184
    %353 = vmatpush1.msra.mxu0 %v183
    %354 = vmatprep.subr.mxu0 %v188
    %355 = vmatpush1.msra.mxu0 %v187
    %356 = vmatprep.subr.mxu0 %v192
    %357 = vmatpush1.msra.mxu0 %v191
    %358 = vmatprep.subr.mxu0 %v196
    %359 = vmatpush1.msra.mxu0 %v195
    %360 = vmatprep.mubr.f32.mxu0 %v66
    %361 = vmatmul.mubr.f32.gmra.mrb[0].mxu0 %v65
    %v362 = vpop.f32.mrb[0].mxu0
    %v363 = vadd.f32 %v210, %v362
    %v364 = vpop.f32.mrb[0].mxu0
    %v365 = vadd.f32 %v214, %v364
    %366 = vmatprep.mubr.f32.mxu0 %v68
    %367 = vmatmul.mubr.f32.gmra.mrb[0].mxu0 %v67
    %v368 = vpop.f32.mrb[0].mxu0
    %v369 = vadd.f32 %v210, %v368
    %v370 = vpop.f32.mrb[0].mxu0
    %v371 = vadd.f32 %v214, %v370
    %372 = vdwg.mxu0
    %v373 = vld [vmem:[#allocation2] sm:$0x3]
    %v374 = vld [vmem:[#allocation3] sm:$0x3]
    %v375 = vld [vmem:[#allocation9] sm:$0xff]
    %v376 = vld [vmem:[#allocation9 + $0x8] sm:$0xff]
    %v377 = vld [vmem:[#allocation9 + $0x10] sm:$0xff]
    %v378 = vld [vmem:[#allocation9 + $0x18] sm:$0xff]
    %v379 = vld [vmem:[#allocation9 + $0x20] sm:$0xff]
    %v380 = vld [vmem:[#allocation9 + $0x28] sm:$0xff]
    %v381 = vld [vmem:[#allocation9 + $0x30] sm:$0xff]
    %v382 = vld [vmem:[#allocation9 + $0x38] sm:$0xff]
    %v383 = vld [vmem:[#allocation9 + $0x40] sm:$0xff]
    %v384 = vld [vmem:[#allocation9 + $0x48] sm:$0xff]
    %v385 = vld [vmem:[#allocation9 + $0x50] sm:$0xff]
    %v386 = vld [vmem:[#allocation9 + $0x58] sm:$0xff]
    %v387 = vld [vmem:[#allocation9 + $0x60] sm:$0xff]
    %v388 = vld [vmem:[#allocation9 + $0x68] sm:$0xff]
    %v389 = vld [vmem:[#allocation9 + $0x70] sm:$0xff]
    %v390 = vld [vmem:[#allocation9 + $0x78] sm:$0xff]
    %v391 = vld [vmem:[#allocation9 + $0x80] sm:$0xff]
    %v392 = vld [vmem:[#allocation9 + $0x88] sm:$0xff]
    %v393 = vld [vmem:[#allocation9 + $0x90] sm:$0xff]
    %v394 = vld [vmem:[#allocation9 + $0x98] sm:$0xff]
    %v395 = vld [vmem:[#allocation9 + $0xa0] sm:$0xff]
    %v396 = vld [vmem:[#allocation9 + $0xa8] sm:$0xff]
    %v397 = vld [vmem:[#allocation9 + $0xb0] sm:$0xff]
    %v398 = vld [vmem:[#allocation9 + $0xb8] sm:$0xff]
    %v399 = vld [vmem:[#allocation9 + $0xc0] sm:$0xff]
    %v400 = vld [vmem:[#allocation9 + $0xc8] sm:$0xff]
    %v401 = vld [vmem:[#allocation9 + $0xd0] sm:$0xff]
    %v402 = vld [vmem:[#allocation9 + $0xd8] sm:$0xff]
    %v403 = vld [vmem:[#allocation9 + $0xe0] sm:$0xff]
    %v404 = vld [vmem:[#allocation9 + $0xe8] sm:$0xff]
    %v405 = vld [vmem:[#allocation9 + $0xf0] sm:$0xff]
    %v406 = vld [vmem:[#allocation9 + $0xf8] sm:$0xff]
    %v407 = vld [vmem:[#allocation9 + $0x100] sm:$0xff]
    %v408 = vld [vmem:[#allocation9 + $0x108] sm:$0xff]
    %v409 = vld [vmem:[#allocation9 + $0x110] sm:$0xff]
    %v410 = vld [vmem:[#allocation9 + $0x118] sm:$0xff]
    %v411 = vld [vmem:[#allocation9 + $0x120] sm:$0xff]
    %v412 = vld [vmem:[#allocation9 + $0x128] sm:$0xff]
    %v413 = vld [vmem:[#allocation9 + $0x130] sm:$0xff]
    %v414 = vld [vmem:[#allocation9 + $0x138] sm:$0xff]
    %v415 = vld [vmem:[#allocation9 + $0x140] sm:$0xff]
    %v416 = vld [vmem:[#allocation9 + $0x148] sm:$0xff]
    %v417 = vld [vmem:[#allocation9 + $0x150] sm:$0xff]
    %v418 = vld [vmem:[#allocation9 + $0x158] sm:$0xff]
    %v419 = vld [vmem:[#allocation9 + $0x160] sm:$0xff]
    %v420 = vld [vmem:[#allocation9 + $0x168] sm:$0xff]
    %v421 = vld [vmem:[#allocation9 + $0x170] sm:$0xff]
    %v422 = vld [vmem:[#allocation9 + $0x178] sm:$0xff]
    %v423 = vld [vmem:[#allocation9 + $0x180] sm:$0xff]
    %v424 = vld [vmem:[#allocation9 + $0x188] sm:$0xff]
    %v425 = vld [vmem:[#allocation9 + $0x190] sm:$0xff]
    %v426 = vld [vmem:[#allocation9 + $0x198] sm:$0xff]
    %v427 = vld [vmem:[#allocation9 + $0x1a0] sm:$0xff]
    %v428 = vld [vmem:[#allocation9 + $0x1a8] sm:$0xff]
    %v429 = vld [vmem:[#allocation9 + $0x1b0] sm:$0xff]
    %v430 = vld [vmem:[#allocation9 + $0x1b8] sm:$0xff]
    %v431 = vld [vmem:[#allocation9 + $0x1c0] sm:$0xff]
    %v432 = vld [vmem:[#allocation9 + $0x1c8] sm:$0xff]
    %v433 = vld [vmem:[#allocation9 + $0x1d0] sm:$0xff]
    %v434 = vld [vmem:[#allocation9 + $0x1d8] sm:$0xff]
    %v435 = vld [vmem:[#allocation9 + $0x1e0] sm:$0xff]
    %v436 = vld [vmem:[#allocation9 + $0x1e8] sm:$0xff]
    %v437 = vld [vmem:[#allocation9 + $0x1f0] sm:$0xff]
    %v438 = vld [vmem:[#allocation9 + $0x1f8] sm:$0xff]
    %439 = vmatprep.subr.mxu0 %v376
    %440 = vmatpush1.msra.mxu0 %v375
    %441 = vmatprep.subr.mxu0 %v380
    %442 = vmatpush1.msra.mxu0 %v379
    %443 = vmatprep.subr.mxu0 %v384
    %444 = vmatpush1.msra.mxu0 %v383
    %445 = vmatprep.subr.mxu0 %v388
    %446 = vmatpush1.msra.mxu0 %v387
    %447 = vmatprep.subr.mxu0 %v392
    %448 = vmatpush1.msra.mxu0 %v391
    %449 = vmatprep.subr.mxu0 %v396
    %450 = vmatpush1.msra.mxu0 %v395
    %451 = vmatprep.subr.mxu0 %v400
    %452 = vmatpush1.msra.mxu0 %v399
    %453 = vmatprep.subr.mxu0 %v404
    %454 = vmatpush1.msra.mxu0 %v403
    %455 = vmatprep.subr.mxu0 %v408
    %456 = vmatpush1.msra.mxu0 %v407
    %457 = vmatprep.subr.mxu0 %v412
    %458 = vmatpush1.msra.mxu0 %v411
    %459 = vmatprep.subr.mxu0 %v416
    %460 = vmatpush1.msra.mxu0 %v415
    %461 = vmatprep.subr.mxu0 %v420
    %462 = vmatpush1.msra.mxu0 %v419
    %463 = vmatprep.subr.mxu0 %v424
    %464 = vmatpush1.msra.mxu0 %v423
    %465 = vmatprep.subr.mxu0 %v428
    %466 = vmatpush1.msra.mxu0 %v427
    %467 = vmatprep.subr.mxu0 %v432
    %468 = vmatpush1.msra.mxu0 %v431
    %469 = vmatprep.subr.mxu0 %v436
    %470 = vmatpush1.msra.mxu0 %v435
    %471 = vmatprep.subr.mxu0 0.0
    %472 = vmatpush1.msra.mxu0 0.0
    %473 = vmatprep.subr.mxu0 0.0
    %474 = vmatpush1.msra.mxu0 0.0
    %475 = vmatprep.subr.mxu0 0.0
    %476 = vmatpush1.msra.mxu0 0.0
    %477 = vmatprep.subr.mxu0 0.0
    %478 = vmatpush1.msra.mxu0 0.0
    %479 = vmatprep.subr.mxu0 0.0
    %480 = vmatpush1.msra.mxu0 0.0
    %481 = vmatprep.subr.mxu0 0.0
    %482 = vmatpush1.msra.mxu0 0.0
    %483 = vmatprep.subr.mxu0 0.0
    %484 = vmatpush1.msra.mxu0 0.0
    %485 = vmatprep.subr.mxu0 0.0
    %486 = vmatpush1.msra.mxu0 0.0
    %487 = vmatprep.subr.mxu0 0.0
    %488 = vmatpush1.msra.mxu0 0.0
    %489 = vmatprep.subr.mxu0 0.0
    %490 = vmatpush1.msra.mxu0 0.0
    %491 = vmatprep.subr.mxu0 0.0
    %492 = vmatpush1.msra.mxu0 0.0
    %493 = vmatprep.subr.mxu0 0.0
    %494 = vmatpush1.msra.mxu0 0.0
    %495 = vmatprep.subr.mxu0 0.0
    %496 = vmatpush1.msra.mxu0 0.0
    %497 = vmatprep.subr.mxu0 0.0
    %498 = vmatpush1.msra.mxu0 0.0
    %499 = vmatprep.subr.mxu0 0.0
    %500 = vmatpush1.msra.mxu0 0.0
    %501 = vmatprep.subr.mxu0 0.0
    %502 = vmatpush1.msra.mxu0 0.0
    %503 = vmatprep.mubr.f32.mxu0 0.0
    %504 = vmatmul.mubr.f32.gmra.mrb[0].mxu0 %v373
    %v505 = vpop.f32.mrb[0].mxu0
    %v506 = vadd.f32 0.0, %v505
    %v507 = vpop.f32.mrb[0].mxu0
    %v508 = vadd.f32 0.0, %v507
    %509 = vdwg.mxu0
    %510 = vmatprep.subr.mxu0 %v378
    %511 = vmatpush1.msra.mxu0 %v377
    %512 = vmatprep.subr.mxu0 %v382
    %513 = vmatpush1.msra.mxu0 %v381
    %514 = vmatprep.subr.mxu0 %v386
    %515 = vmatpush1.msra.mxu0 %v385
    %516 = vmatprep.subr.mxu0 %v390
    %517 = vmatpush1.msra.mxu0 %v389
    %518 = vmatprep.subr.mxu0 %v394
    %519 = vmatpush1.msra.mxu0 %v393
    %520 = vmatprep.subr.mxu0 %v398
    %521 = vmatpush1.msra.mxu0 %v397
    %522 = vmatprep.subr.mxu0 %v402
    %523 = vmatpush1.msra.mxu0 %v401
    %524 = vmatprep.subr.mxu0 %v406
    %525 = vmatpush1.msra.mxu0 %v405
    %526 = vmatprep.subr.mxu0 %v410
    %527 = vmatpush1.msra.mxu0 %v409
    %528 = vmatprep.subr.mxu0 %v414
    %529 = vmatpush1.msra.mxu0 %v413
    %530 = vmatprep.subr.mxu0 %v418
    %531 = vmatpush1.msra.mxu0 %v417
    %532 = vmatprep.subr.mxu0 %v422
    %533 = vmatpush1.msra.mxu0 %v421
    %534 = vmatprep.subr.mxu0 %v426
    %535 = vmatpush1.msra.mxu0 %v425
    %536 = vmatprep.subr.mxu0 %v430
    %537 = vmatpush1.msra.mxu0 %v429
    %538 = vmatprep.subr.mxu0 %v434
    %539 = vmatpush1.msra.mxu0 %v433
    %540 = vmatprep.subr.mxu0 %v438
    %541 = vmatpush1.msra.mxu0 %v437
    %542 = vmatprep.subr.mxu0 0.0
    %543 = vmatpush1.msra.mxu0 0.0
    %544 = vmatprep.subr.mxu0 0.0
    %545 = vmatpush1.msra.mxu0 0.0
    %546 = vmatprep.subr.mxu0 0.0
    %547 = vmatpush1.msra.mxu0 0.0
    %548 = vmatprep.subr.mxu0 0.0
    %549 = vmatpush1.msra.mxu0 0.0
    %550 = vmatprep.subr.mxu0 0.0
    %551 = vmatpush1.msra.mxu0 0.0
    %552 = vmatprep.subr.mxu0 0.0
    %553 = vmatpush1.msra.mxu0 0.0
    %554 = vmatprep.subr.mxu0 0.0
    %555 = vmatpush1.msra.mxu0 0.0
    %556 = vmatprep.subr.mxu0 0.0
    %557 = vmatpush1.msra.mxu0 0.0
    %558 = vmatprep.subr.mxu0 0.0
    %559 = vmatpush1.msra.mxu0 0.0
    %560 = vmatprep.subr.mxu0 0.0
    %561 = vmatpush1.msra.mxu0 0.0
    %562 = vmatprep.subr.mxu0 0.0
    %563 = vmatpush1.msra.mxu0 0.0
    %564 = vmatprep.subr.mxu0 0.0
    %565 = vmatpush1.msra.mxu0 0.0
    %566 = vmatprep.subr.mxu0 0.0
    %567 = vmatpush1.msra.mxu0 0.0
    %568 = vmatprep.subr.mxu0 0.0
    %569 = vmatpush1.msra.mxu0 0.0
    %570 = vmatprep.subr.mxu0 0.0
    %571 = vmatpush1.msra.mxu0 0.0
    %572 = vmatprep.subr.mxu0 0.0
    %573 = vmatpush1.msra.mxu0 0.0
    %574 = vmatprep.mubr.f32.mxu0 0.0
    %575 = vmatmul.mubr.f32.gmra.mrb[0].mxu0 %v373
    %v576 = vpop.f32.mrb[0].mxu0
    %v577 = vadd.f32 0.0, %v576
    %v578 = vpop.f32.mrb[0].mxu0
    %v579 = vadd.f32 0.0, %v578
    %580 = vdwg.mxu0
    %v581 = vadd.f32 %v286, %v506
    %v582 = vadd.f32 %v288, %v508
    %v583 = vadd.f32 %v363, %v577
    %v584 = vadd.f32 %v365, %v579
    %v585 = vmul.f32 %v581, 0.5
    %v586 = vtanh.pop %v585
    %v587 = vadd.f32 %v586, 1.0
    %v588 = vmul.f32 %v587, 0.5
    %v589 = vmul.f32 %v582, 0.5
    %v590 = vtanh.pop %v589
    %v591 = vadd.f32 %v590, 1.0
    %v592 = vmul.f32 %v591, 0.5
    %v593 = vtanh.pop %v583
    %v594 = vmul.f32 %v584, 0.5
    %v595 = vtanh.pop %v594
    %v596 = vadd.f32 %v595, 1.0
    %v597 = vmul.f32 %v596, 0.5
    %v598 = vmul.f32 %v592, %v374
    %v599 = vmul.f32 %v588, %v593
    %v600 = vadd.f32 %v598, %v599
    %v601 = vtanh.pop %v600
    %v602 = vmul.f32 %v597, %v601
    %603 = vmatprep.subr.mxu0 %v376
    %604 = vmatpush1.msra.mxu0 %v375
    %605 = vmatprep.subr.mxu0 %v380
    %606 = vmatpush1.msra.mxu0 %v379
    %607 = vmatprep.subr.mxu0 %v384
    %608 = vmatpush1.msra.mxu0 %v383
    %609 = vmatprep.subr.mxu0 %v388
    %610 = vmatpush1.msra.mxu0 %v387
    %611 = vmatprep.subr.mxu0 %v392
    %612 = vmatpush1.msra.mxu0 %v391
    %613 = vmatprep.subr.mxu0 %v396
    %614 = vmatpush1.msra.mxu0 %v395
    %615 = vmatprep.subr.mxu0 %v400
    %616 = vmatpush1.msra.mxu0 %v399
    %617 = vmatprep.subr.mxu0 %v404
    %618 = vmatpush1.msra.mxu0 %v403
    %619 = vmatprep.subr.mxu0 %v408
    %620 = vmatpush1.msra.mxu0 %v407
    %621 = vmatprep.subr.mxu0 %v412
    %622 = vmatpush1.msra.mxu0 %v411
    %623 = vmatprep.subr.mxu0 %v416
    %624 = vmatpush1.msra.mxu0 %v415
    %625 = vmatprep.subr.mxu0 %v420
    %626 = vmatpush1.msra.mxu0 %v419
    %627 = vmatprep.subr.mxu0 %v424
    %628 = vmatpush1.msra.mxu0 %v423
    %629 = vmatprep.subr.mxu0 %v428
    %630 = vmatpush1.msra.mxu0 %v427
    %631 = vmatprep.subr.mxu0 %v432
    %632 = vmatpush1.msra.mxu0 %v431
    %633 = vmatprep.subr.mxu0 %v436
    %634 = vmatpush1.msra.mxu0 %v435
    %635 = vmatprep.subr.mxu0 0.0
    %636 = vmatpush1.msra.mxu0 0.0
    %637 = vmatprep.subr.mxu0 0.0
    %638 = vmatpush1.msra.mxu0 0.0
    %639 = vmatprep.subr.mxu0 0.0
    %640 = vmatpush1.msra.mxu0 0.0
    %641 = vmatprep.subr.mxu0 0.0
    %642 = vmatpush1.msra.mxu0 0.0
    %643 = vmatprep.subr.mxu0 0.0
    %644 = vmatpush1.msra.mxu0 0.0
    %645 = vmatprep.subr.mxu0 0.0
    %646 = vmatpush1.msra.mxu0 0.0
    %647 = vmatprep.subr.mxu0 0.0
    %648 = vmatpush1.msra.mxu0 0.0
    %649 = vmatprep.subr.mxu0 0.0
    %650 = vmatpush1.msra.mxu0 0.0
    %651 = vmatprep.subr.mxu0 0.0
    %652 = vmatpush1.msra.mxu0 0.0
    %653 = vmatprep.subr.mxu0 0.0
    %654 = vmatpush1.msra.mxu0 0.0
    %655 = vmatprep.subr.mxu0 0.0
    %656 = vmatpush1.msra.mxu0 0.0
    %657 = vmatprep.subr.mxu0 0.0
    %658 = vmatpush1.msra.mxu0 0.0
    %659 = vmatprep.subr.mxu0 0.0
    %660 = vmatpush1.msra.mxu0 0.0
    %661 = vmatprep.subr.mxu0 0.0
    %662 = vmatpush1.msra.mxu0 0.0
    %663 = vmatprep.subr.mxu0 0.0
    %664 = vmatpush1.msra.mxu0 0.0
    %665 = vmatprep.subr.mxu0 0.0
    %666 = vmatpush1.msra.mxu0 0.0
    %667 = vmatprep.mubr.f32.mxu0 0.0
    %668 = vmatmul.mubr.f32.gmra.mrb[0].mxu0 %v602
    %v669 = vpop.f32.mrb[0].mxu0
    %v670 = vadd.f32 0.0, %v669
    %v671 = vpop.f32.mrb[0].mxu0
    %v672 = vadd.f32 0.0, %v671
    %673 = vdwg.mxu0
    %674 = vmatprep.subr.mxu0 %v378
    %675 = vmatpush1.msra.mxu0 %v377
    %676 = vmatprep.subr.mxu0 %v382
    %677 = vmatpush1.msra.mxu0 %v381
    %678 = vmatprep.subr.mxu0 %v386
    %679 = vmatpush1.msra.mxu0 %v385
    %680 = vmatprep.subr.mxu0 %v390
    %681 = vmatpush1.msra.mxu0 %v389
    %682 = vmatprep.subr.mxu0 %v394
    %683 = vmatpush1.msra.mxu0 %v393
    %684 = vmatprep.subr.mxu0 %v398
    %685 = vmatpush1.msra.mxu0 %v397
    %686 = vmatprep.subr.mxu0 %v402
    %687 = vmatpush1.msra.mxu0 %v401
    %688 = vmatprep.subr.mxu0 %v406
    %689 = vmatpush1.msra.mxu0 %v405
    %690 = vmatprep.subr.mxu0 %v410
    %691 = vmatpush1.msra.mxu0 %v409
    %692 = vmatprep.subr.mxu0 %v414
    %693 = vmatpush1.msra.mxu0 %v413
    %694 = vmatprep.subr.mxu0 %v418
    %695 = vmatpush1.msra.mxu0 %v417
    %696 = vmatprep.subr.mxu0 %v422
    %697 = vmatpush1.msra.mxu0 %v421
    %698 = vmatprep.subr.mxu0 %v426
    %699 = vmatpush1.msra.mxu0 %v425
    %700 = vmatprep.subr.mxu0 %v430
    %701 = vmatpush1.msra.mxu0 %v429
    %702 = vmatprep.subr.mxu0 %v434
    %703 = vmatpush1.msra.mxu0 %v433
    %704 = vmatprep.subr.mxu0 %v438
    %705 = vmatpush1.msra.mxu0 %v437
    %706 = vmatprep.subr.mxu0 0.0
    %707 = vmatpush1.msra.mxu0 0.0
    %708 = vmatprep.subr.mxu0 0.0
    %709 = vmatpush1.msra.mxu0 0.0
    %710 = vmatprep.subr.mxu0 0.0
    %711 = vmatpush1.msra.mxu0 0.0
    %712 = vmatprep.subr.mxu0 0.0
    %713 = vmatpush1.msra.mxu0 0.0
    %714 = vmatprep.subr.mxu0 0.0
    %715 = vmatpush1.msra.mxu0 0.0
    %716 = vmatprep.subr.mxu0 0.0
    %717 = vmatpush1.msra.mxu0 0.0
    %718 = vmatprep.subr.mxu0 0.0
    %719 = vmatpush1.msra.mxu0 0.0
    %720 = vmatprep.subr.mxu0 0.0
    %721 = vmatpush1.msra.mxu0 0.0
    %722 = vmatprep.subr.mxu0 0.0
    %723 = vmatpush1.msra.mxu0 0.0
    %724 = vmatprep.subr.mxu0 0.0
    %725 = vmatpush1.msra.mxu0 0.0
    %726 = vmatprep.subr.mxu0 0.0
    %727 = vmatpush1.msra.mxu0 0.0
    %728 = vmatprep.subr.mxu0 0.0
    %729 = vmatpush1.msra.mxu0 0.0
    %730 = vmatprep.subr.mxu0 0.0
    %731 = vmatpush1.msra.mxu0 0.0
    %732 = vmatprep.subr.mxu0 0.0
    %733 = vmatpush1.msra.mxu0 0.0
    %734 = vmatprep.subr.mxu0 0.0
    %735 = vmatpush1.msra.mxu0 0.0
    %736 = vmatprep.subr.mxu0 0.0
    %737 = vmatpush1.msra.mxu0 0.0
    %738 = vmatprep.mubr.f32.mxu0 0.0
    %739 = vmatmul.mubr.f32.gmra.mrb[0].mxu0 %v602
    %v740 = vpop.f32.mrb[0].mxu0
    %v741 = vadd.f32 0.0, %v740
    %v742 = vpop.f32.mrb[0].mxu0
    %v743 = vadd.f32 0.0, %v742
    %744 = vdwg.mxu0
    %v749 = vrot.slane %v670, 6
    %v750 = vrot.slane %v672, 6
    %v751 = vrot.slane %v741, 6
    %v752 = vrot.slane %v743, 6
    %v757 = vadd.f32 %v286, %v749
    %v758 = vadd.f32 %v288, %v750
    %v759 = vadd.f32 %v363, %v751
    %v760 = vadd.f32 %v365, %v752
    %v761 = vmul.f32 %v757, 0.5
    %v762 = vtanh.pop %v761
    %v763 = vadd.f32 %v762, 1.0
    %v764 = vmul.f32 %v763, 0.5
    %v765 = vmul.f32 %v758, 0.5
    %v766 = vtanh.pop %v765
    %v767 = vadd.f32 %v766, 1.0
    %v768 = vmul.f32 %v767, 0.5
    %v769 = vtanh.pop %v759
    %v770 = vmul.f32 %v760, 0.5
    %v771 = vtanh.pop %v770
    %v772 = vadd.f32 %v771, 1.0
    %v773 = vmul.f32 %v772, 0.5
    %v775 = vrot.slane %v600, 6
    %v777 = vmul.f32 %v768, %v775
    %v778 = vmul.f32 %v764, %v769
    %v779 = vadd.f32 %v777, %v778
    %v780 = vtanh.pop %v779
    %v781 = vmul.f32 %v773, %v780
    %v783 = vrot.slane %v781, 2
    %785 = vmatprep.subr.mxu0 %v376
    %786 = vmatpush1.msra.mxu0 %v375
    %787 = vmatprep.subr.mxu0 %v380
    %788 = vmatpush1.msra.mxu0 %v379
    %789 = vmatprep.subr.mxu0 %v384
    %790 = vmatpush1.msra.mxu0 %v383
    %791 = vmatprep.subr.mxu0 %v388
    %792 = vmatpush1.msra.mxu0 %v387
    %793 = vmatprep.subr.mxu0 %v392
    %794 = vmatpush1.msra.mxu0 %v391
    %795 = vmatprep.subr.mxu0 %v396
    %796 = vmatpush1.msra.mxu0 %v395
    %797 = vmatprep.subr.mxu0 %v400
    %798 = vmatpush1.msra.mxu0 %v399
    %799 = vmatprep.subr.mxu0 %v404
    %800 = vmatpush1.msra.mxu0 %v403
    %801 = vmatprep.subr.mxu0 %v408
    %802 = vmatpush1.msra.mxu0 %v407
    %803 = vmatprep.subr.mxu0 %v412
    %804 = vmatpush1.msra.mxu0 %v411
    %805 = vmatprep.subr.mxu0 %v416
    %806 = vmatpush1.msra.mxu0 %v415
    %807 = vmatprep.subr.mxu0 %v420
    %808 = vmatpush1.msra.mxu0 %v419
    %809 = vmatprep.subr.mxu0 %v424
    %810 = vmatpush1.msra.mxu0 %v423
    %811 = vmatprep.subr.mxu0 %v428
    %812 = vmatpush1.msra.mxu0 %v427
    %813 = vmatprep.subr.mxu0 %v432
    %814 = vmatpush1.msra.mxu0 %v431
    %815 = vmatprep.subr.mxu0 %v436
    %816 = vmatpush1.msra.mxu0 %v435
    %817 = vmatprep.subr.mxu0 0.0
    %818 = vmatpush1.msra.mxu0 0.0
    %819 = vmatprep.subr.mxu0 0.0
    %820 = vmatpush1.msra.mxu0 0.0
    %821 = vmatprep.subr.mxu0 0.0
    %822 = vmatpush1.msra.mxu0 0.0
    %823 = vmatprep.subr.mxu0 0.0
    %824 = vmatpush1.msra.mxu0 0.0
    %825 = vmatprep.subr.mxu0 0.0
    %826 = vmatpush1.msra.mxu0 0.0
    %827 = vmatprep.subr.mxu0 0.0
    %828 = vmatpush1.msra.mxu0 0.0
    %829 = vmatprep.subr.mxu0 0.0
    %830 = vmatpush1.msra.mxu0 0.0
    %831 = vmatprep.subr.mxu0 0.0
    %832 = vmatpush1.msra.mxu0 0.0
    %833 = vmatprep.subr.mxu0 0.0
    %834 = vmatpush1.msra.mxu0 0.0
    %835 = vmatprep.subr.mxu0 0.0
    %836 = vmatpush1.msra.mxu0 0.0
    %837 = vmatprep.subr.mxu0 0.0
    %838 = vmatpush1.msra.mxu0 0.0
    %839 = vmatprep.subr.mxu0 0.0
    %840 = vmatpush1.msra.mxu0 0.0
    %841 = vmatprep.subr.mxu0 0.0
    %842 = vmatpush1.msra.mxu0 0.0
    %843 = vmatprep.subr.mxu0 0.0
    %844 = vmatpush1.msra.mxu0 0.0
    %845 = vmatprep.subr.mxu0 0.0
    %846 = vmatpush1.msra.mxu0 0.0
    %847 = vmatprep.subr.mxu0 0.0
    %848 = vmatpush1.msra.mxu0 0.0
    %849 = vmatprep.mubr.f32.mxu0 0.0
    %850 = vmatmul.mubr.f32.gmra.mrb[0].mxu0 %v783
    %v851 = vpop.f32.mrb[0].mxu0
    %v852 = vadd.f32 0.0, %v851
    %v853 = vpop.f32.mrb[0].mxu0
    %v854 = vadd.f32 0.0, %v853
    %855 = vdwg.mxu0
    %856 = vmatprep.subr.mxu0 %v378
    %857 = vmatpush1.msra.mxu0 %v377
    %858 = vmatprep.subr.mxu0 %v382
    %859 = vmatpush1.msra.mxu0 %v381
    %860 = vmatprep.subr.mxu0 %v386
    %861 = vmatpush1.msra.mxu0 %v385
    %862 = vmatprep.subr.mxu0 %v390
    %863 = vmatpush1.msra.mxu0 %v389
    %864 = vmatprep.subr.mxu0 %v394
    %865 = vmatpush1.msra.mxu0 %v393
    %866 = vmatprep.subr.mxu0 %v398
    %867 = vmatpush1.msra.mxu0 %v397
    %868 = vmatprep.subr.mxu0 %v402
    %869 = vmatpush1.msra.mxu0 %v401
    %870 = vmatprep.subr.mxu0 %v406
    %871 = vmatpush1.msra.mxu0 %v405
    %872 = vmatprep.subr.mxu0 %v410
    %873 = vmatpush1.msra.mxu0 %v409
    %874 = vmatprep.subr.mxu0 %v414
    %875 = vmatpush1.msra.mxu0 %v413
    %876 = vmatprep.subr.mxu0 %v418
    %877 = vmatpush1.msra.mxu0 %v417
    %878 = vmatprep.subr.mxu0 %v422
    %879 = vmatpush1.msra.mxu0 %v421
    %880 = vmatprep.subr.mxu0 %v426
    %881 = vmatpush1.msra.mxu0 %v425
    %882 = vmatprep.subr.mxu0 %v430
    %883 = vmatpush1.msra.mxu0 %v429
    %884 = vmatprep.subr.mxu0 %v434
    %885 = vmatpush1.msra.mxu0 %v433
    %886 = vmatprep.subr.mxu0 %v438
    %887 = vmatpush1.msra.mxu0 %v437
    %888 = vmatprep.subr.mxu0 0.0
    %889 = vmatpush1.msra.mxu0 0.0
    %890 = vmatprep.subr.mxu0 0.0
    %891 = vmatpush1.msra.mxu0 0.0
    %892 = vmatprep.subr.mxu0 0.0
    %893 = vmatpush1.msra.mxu0 0.0
    %894 = vmatprep.subr.mxu0 0.0
    %895 = vmatpush1.msra.mxu0 0.0
    %896 = vmatprep.subr.mxu0 0.0
    %897 = vmatpush1.msra.mxu0 0.0
    %898 = vmatprep.subr.mxu0 0.0
    %899 = vmatpush1.msra.mxu0 0.0
    %900 = vmatprep.subr.mxu0 0.0
    %901 = vmatpush1.msra.mxu0 0.0
    %902 = vmatprep.subr.mxu0 0.0
    %903 = vmatpush1.msra.mxu0 0.0
    %904 = vmatprep.subr.mxu0 0.0
    %905 = vmatpush1.msra.mxu0 0.0
    %906 = vmatprep.subr.mxu0 0.0
    %907 = vmatpush1.msra.mxu0 0.0
    %908 = vmatprep.subr.mxu0 0.0
    %909 = vmatpush1.msra.mxu0 0.0
    %910 = vmatprep.subr.mxu0 0.0
    %911 = vmatpush1.msra.mxu0 0.0
    %912 = vmatprep.subr.mxu0 0.0
    %913 = vmatpush1.msra.mxu0 0.0
    %914 = vmatprep.subr.mxu0 0.0
    %915 = vmatpush1.msra.mxu0 0.0
    %916 = vmatprep.subr.mxu0 0.0
    %917 = vmatpush1.msra.mxu0 0.0
    %918 = vmatprep.subr.mxu0 0.0
    %919 = vmatpush1.msra.mxu0 0.0
    %920 = vmatprep.mubr.f32.mxu0 0.0
    %921 = vmatmul.mubr.f32.gmra.mrb[0].mxu0 %v783
    %v922 = vpop.f32.mrb[0].mxu0
    %v923 = vadd.f32 0.0, %v922
    %v924 = vpop.f32.mrb[0].mxu0
    %v925 = vadd.f32 0.0, %v924
    %926 = vdwg.mxu0
    %v931 = vrot.slane %v852, 4
    %v932 = vrot.slane %v854, 4
    %v933 = vrot.slane %v923, 4
    %v934 = vrot.slane %v925, 4
    %v939 = vadd.f32 %v286, %v931
    %v940 = vadd.f32 %v288, %v932
    %v941 = vadd.f32 %v363, %v933
    %v942 = vadd.f32 %v365, %v934
    %v943 = vmul.f32 %v939, 0.5
    %v944 = vtanh.pop %v943
    %v945 = vadd.f32 %v944, 1.0
    %v946 = vmul.f32 %v945, 0.5
    %v947 = vmul.f32 %v940, 0.5
    %v948 = vtanh.pop %v947
    %v949 = vadd.f32 %v948, 1.0
    %v950 = vmul.f32 %v949, 0.5
    %v951 = vtanh.pop %v941
    %v952 = vmul.f32 %v942, 0.5
    %v953 = vtanh.pop %v952
    %v954 = vadd.f32 %v953, 1.0
    %v955 = vmul.f32 %v954, 0.5
    %v957 = vrot.slane %v779, 6
    %v959 = vmul.f32 %v950, %v957
    %v960 = vmul.f32 %v946, %v951
    %v961 = vadd.f32 %v959, %v960
    %v962 = vtanh.pop %v961
    %v963 = vmul.f32 %v955, %v962
    %v965 = vrot.slane %v963, 4
    %967 = vmatprep.subr.mxu0 %v376
    %968 = vmatpush1.msra.mxu0 %v375
    %969 = vmatprep.subr.mxu0 %v380
    %970 = vmatpush1.msra.mxu0 %v379
    %971 = vmatprep.subr.mxu0 %v384
    %972 = vmatpush1.msra.mxu0 %v383
    %973 = vmatprep.subr.mxu0 %v388
    %974 = vmatpush1.msra.mxu0 %v387
    %975 = vmatprep.subr.mxu0 %v392
    %976 = vmatpush1.msra.mxu0 %v391
    %977 = vmatprep.subr.mxu0 %v396
    %978 = vmatpush1.msra.mxu0 %v395
    %979 = vmatprep.subr.mxu0 %v400
    %980 = vmatpush1.msra.mxu0 %v399
    %981 = vmatprep.subr.mxu0 %v404
    %982 = vmatpush1.msra.mxu0 %v403
    %983 = vmatprep.subr.mxu0 %v408
    %984 = vmatpush1.msra.mxu0 %v407
    %985 = vmatprep.subr.mxu0 %v412
    %986 = vmatpush1.msra.mxu0 %v411
    %987 = vmatprep.subr.mxu0 %v416
    %988 = vmatpush1.msra.mxu0 %v415
    %989 = vmatprep.subr.mxu0 %v420
    %990 = vmatpush1.msra.mxu0 %v419
    %991 = vmatprep.subr.mxu0 %v424
    %992 = vmatpush1.msra.mxu0 %v423
    %993 = vmatprep.subr.mxu0 %v428
    %994 = vmatpush1.msra.mxu0 %v427
    %995 = vmatprep.subr.mxu0 %v432
    %996 = vmatpush1.msra.mxu0 %v431
    %997 = vmatprep.subr.mxu0 %v436
    %998 = vmatpush1.msra.mxu0 %v435
    %999 = vmatprep.subr.mxu0 0.0
    %1000 = vmatpush1.msra.mxu0 0.0
    %1001 = vmatprep.subr.mxu0 0.0
    %1002 = vmatpush1.msra.mxu0 0.0
    %1003 = vmatprep.subr.mxu0 0.0
    %1004 = vmatpush1.msra.mxu0 0.0
    %1005 = vmatprep.subr.mxu0 0.0
    %1006 = vmatpush1.msra.mxu0 0.0
    %1007 = vmatprep.subr.mxu0 0.0
    %1008 = vmatpush1.msra.mxu0 0.0
    %1009 = vmatprep.subr.mxu0 0.0
    %1010 = vmatpush1.msra.mxu0 0.0
    %1011 = vmatprep.subr.mxu0 0.0
    %1012 = vmatpush1.msra.mxu0 0.0
    %1013 = vmatprep.subr.mxu0 0.0
    %1014 = vmatpush1.msra.mxu0 0.0
    %1015 = vmatprep.subr.mxu0 0.0
    %1016 = vmatpush1.msra.mxu0 0.0
    %1017 = vmatprep.subr.mxu0 0.0
    %1018 = vmatpush1.msra.mxu0 0.0
    %1019 = vmatprep.subr.mxu0 0.0
    %1020 = vmatpush1.msra.mxu0 0.0
    %1021 = vmatprep.subr.mxu0 0.0
    %1022 = vmatpush1.msra.mxu0 0.0
    %1023 = vmatprep.subr.mxu0 0.0
    %1024 = vmatpush1.msra.mxu0 0.0
    %1025 = vmatprep.subr.mxu0 0.0
    %1026 = vmatpush1.msra.mxu0 0.0
    %1027 = vmatprep.subr.mxu0 0.0
    %1028 = vmatpush1.msra.mxu0 0.0
    %1029 = vmatprep.subr.mxu0 0.0
    %1030 = vmatpush1.msra.mxu0 0.0
    %1031 = vmatprep.mubr.f32.mxu0 0.0
    %1032 = vmatmul.mubr.f32.gmra.mrb[0].mxu0 %v965
    %v1033 = vpop.f32.mrb[0].mxu0
    %v1034 = vadd.f32 0.0, %v1033
    %v1035 = vpop.f32.mrb[0].mxu0
    %v1036 = vadd.f32 0.0, %v1035
    %1037 = vdwg.mxu0
    %1038 = vmatprep.subr.mxu0 %v378
    %1039 = vmatpush1.msra.mxu0 %v377
    %1040 = vmatprep.subr.mxu0 %v382
    %1041 = vmatpush1.msra.mxu0 %v381
    %1042 = vmatprep.subr.mxu0 %v386
    %1043 = vmatpush1.msra.mxu0 %v385
    %1044 = vmatprep.subr.mxu0 %v390
    %1045 = vmatpush1.msra.mxu0 %v389
    %1046 = vmatprep.subr.mxu0 %v394
    %1047 = vmatpush1.msra.mxu0 %v393
    %1048 = vmatprep.subr.mxu0 %v398
    %1049 = vmatpush1.msra.mxu0 %v397
    %1050 = vmatprep.subr.mxu0 %v402
    %1051 = vmatpush1.msra.mxu0 %v401
    %1052 = vmatprep.subr.mxu0 %v406
    %1053 = vmatpush1.msra.mxu0 %v405
    %1054 = vmatprep.subr.mxu0 %v410
    %1055 = vmatpush1.msra.mxu0 %v409
    %1056 = vmatprep.subr.mxu0 %v414
    %1057 = vmatpush1.msra.mxu0 %v413
    %1058 = vmatprep.subr.mxu0 %v418
    %1059 = vmatpush1.msra.mxu0 %v417
    %1060 = vmatprep.subr.mxu0 %v422
    %1061 = vmatpush1.msra.mxu0 %v421
    %1062 = vmatprep.subr.mxu0 %v426
    %1063 = vmatpush1.msra.mxu0 %v425
    %1064 = vmatprep.subr.mxu0 %v430
    %1065 = vmatpush1.msra.mxu0 %v429
    %1066 = vmatprep.subr.mxu0 %v434
    %1067 = vmatpush1.msra.mxu0 %v433
    %1068 = vmatprep.subr.mxu0 %v438
    %1069 = vmatpush1.msra.mxu0 %v437
    %1070 = vmatprep.subr.mxu0 0.0
    %1071 = vmatpush1.msra.mxu0 0.0
    %1072 = vmatprep.subr.mxu0 0.0
    %1073 = vmatpush1.msra.mxu0 0.0
    %1074 = vmatprep.subr.mxu0 0.0
    %1075 = vmatpush1.msra.mxu0 0.0
    %1076 = vmatprep.subr.mxu0 0.0
    %1077 = vmatpush1.msra.mxu0 0.0
    %1078 = vmatprep.subr.mxu0 0.0
    %1079 = vmatpush1.msra.mxu0 0.0
    %1080 = vmatprep.subr.mxu0 0.0
    %1081 = vmatpush1.msra.mxu0 0.0
    %1082 = vmatprep.subr.mxu0 0.0
    %1083 = vmatpush1.msra.mxu0 0.0
    %1084 = vmatprep.subr.mxu0 0.0
    %1085 = vmatpush1.msra.mxu0 0.0
    %1086 = vmatprep.subr.mxu0 0.0
    %1087 = vmatpush1.msra.mxu0 0.0
    %1088 = vmatprep.subr.mxu0 0.0
    %1089 = vmatpush1.msra.mxu0 0.0
    %1090 = vmatprep.subr.mxu0 0.0
    %1091 = vmatpush1.msra.mxu0 0.0
    %1092 = vmatprep.subr.mxu0 0.0
    %1093 = vmatpush1.msra.mxu0 0.0
    %1094 = vmatprep.subr.mxu0 0.0
    %1095 = vmatpush1.msra.mxu0 0.0
    %1096 = vmatprep.subr.mxu0 0.0
    %1097 = vmatpush1.msra.mxu0 0.0
    %1098 = vmatprep.subr.mxu0 0.0
    %1099 = vmatpush1.msra.mxu0 0.0
    %1100 = vmatprep.subr.mxu0 0.0
    %1101 = vmatpush1.msra.mxu0 0.0
    %1102 = vmatprep.mubr.f32.mxu0 0.0
    %1103 = vmatmul.mubr.f32.gmra.mrb[0].mxu0 %v965
    %v1104 = vpop.f32.mrb[0].mxu0
    %v1105 = vadd.f32 0.0, %v1104
    %v1106 = vpop.f32.mrb[0].mxu0
    %v1107 = vadd.f32 0.0, %v1106
    %1108 = vdwg.mxu0
    %v1113 = vrot.slane %v1034, 2
    %v1114 = vrot.slane %v1036, 2
    %v1115 = vrot.slane %v1105, 2
    %v1116 = vrot.slane %v1107, 2
    %v1121 = vadd.f32 %v286, %v1113
    %v1122 = vadd.f32 %v288, %v1114
    %v1123 = vadd.f32 %v363, %v1115
    %v1124 = vadd.f32 %v365, %v1116
    %v1125 = vmul.f32 %v1121, 0.5
    %v1126 = vtanh.pop %v1125
    %v1127 = vadd.f32 %v1126, 1.0
    %v1128 = vmul.f32 %v1127, 0.5
    %v1129 = vmul.f32 %v1122, 0.5
    %v1130 = vtanh.pop %v1129
    %v1131 = vadd.f32 %v1130, 1.0
    %v1132 = vmul.f32 %v1131, 0.5
    %v1133 = vtanh.pop %v1123
    %v1134 = vmul.f32 %v1124, 0.5
    %v1135 = vtanh.pop %v1134
    %v1136 = vadd.f32 %v1135, 1.0
    %v1137 = vmul.f32 %v1136, 0.5
    %v1139 = vrot.slane %v961, 6
    %v1141 = vmul.f32 %v1132, %v1139
    %v1142 = vmul.f32 %v1128, %v1133
    %v1143 = vadd.f32 %v1141, %v1142
    %v1144 = vtanh.pop %v1143
    %v1145 = vmul.f32 %v1137, %v1144
    %v1147 = vrot.slane %v1145, 6
    %1149 = vmatprep.subr.mxu0 %v376
    %1150 = vmatpush1.msra.mxu0 %v375
    %1151 = vmatprep.subr.mxu0 %v380
    %1152 = vmatpush1.msra.mxu0 %v379
    %1153 = vmatprep.subr.mxu0 %v384
    %1154 = vmatpush1.msra.mxu0 %v383
    %1155 = vmatprep.subr.mxu0 %v388
    %1156 = vmatpush1.msra.mxu0 %v387
    %1157 = vmatprep.subr.mxu0 %v392
    %1158 = vmatpush1.msra.mxu0 %v391
    %1159 = vmatprep.subr.mxu0 %v396
    %1160 = vmatpush1.msra.mxu0 %v395
    %1161 = vmatprep.subr.mxu0 %v400
    %1162 = vmatpush1.msra.mxu0 %v399
    %1163 = vmatprep.subr.mxu0 %v404
    %1164 = vmatpush1.msra.mxu0 %v403
    %1165 = vmatprep.subr.mxu0 %v408
    %1166 = vmatpush1.msra.mxu0 %v407
    %1167 = vmatprep.subr.mxu0 %v412
    %1168 = vmatpush1.msra.mxu0 %v411
    %1169 = vmatprep.subr.mxu0 %v416
    %1170 = vmatpush1.msra.mxu0 %v415
    %1171 = vmatprep.subr.mxu0 %v420
    %1172 = vmatpush1.msra.mxu0 %v419
    %1173 = vmatprep.subr.mxu0 %v424
    %1174 = vmatpush1.msra.mxu0 %v423
    %1175 = vmatprep.subr.mxu0 %v428
    %1176 = vmatpush1.msra.mxu0 %v427
    %1177 = vmatprep.subr.mxu0 %v432
    %1178 = vmatpush1.msra.mxu0 %v431
    %1179 = vmatprep.subr.mxu0 %v436
    %1180 = vmatpush1.msra.mxu0 %v435
    %1181 = vmatprep.subr.mxu0 0.0
    %1182 = vmatpush1.msra.mxu0 0.0
    %1183 = vmatprep.subr.mxu0 0.0
    %1184 = vmatpush1.msra.mxu0 0.0
    %1185 = vmatprep.subr.mxu0 0.0
    %1186 = vmatpush1.msra.mxu0 0.0
    %1187 = vmatprep.subr.mxu0 0.0
    %1188 = vmatpush1.msra.mxu0 0.0
    %1189 = vmatprep.subr.mxu0 0.0
    %1190 = vmatpush1.msra.mxu0 0.0
    %1191 = vmatprep.subr.mxu0 0.0
    %1192 = vmatpush1.msra.mxu0 0.0
    %1193 = vmatprep.subr.mxu0 0.0
    %1194 = vmatpush1.msra.mxu0 0.0
    %1195 = vmatprep.subr.mxu0 0.0
    %1196 = vmatpush1.msra.mxu0 0.0
    %1197 = vmatprep.subr.mxu0 0.0
    %1198 = vmatpush1.msra.mxu0 0.0
    %1199 = vmatprep.subr.mxu0 0.0
    %1200 = vmatpush1.msra.mxu0 0.0
    %1201 = vmatprep.subr.mxu0 0.0
    %1202 = vmatpush1.msra.mxu0 0.0
    %1203 = vmatprep.subr.mxu0 0.0
    %1204 = vmatpush1.msra.mxu0 0.0
    %1205 = vmatprep.subr.mxu0 0.0
    %1206 = vmatpush1.msra.mxu0 0.0
    %1207 = vmatprep.subr.mxu0 0.0
    %1208 = vmatpush1.msra.mxu0 0.0
    %1209 = vmatprep.subr.mxu0 0.0
    %1210 = vmatpush1.msra.mxu0 0.0
    %1211 = vmatprep.subr.mxu0 0.0
    %1212 = vmatpush1.msra.mxu0 0.0
    %1213 = vmatprep.mubr.f32.mxu0 0.0
    %1214 = vmatmul.mubr.f32.gmra.mrb[0].mxu0 %v1147
    %v1215 = vpop.f32.mrb[0].mxu0
    %v1216 = vadd.f32 0.0, %v1215
    %v1217 = vpop.f32.mrb[0].mxu0
    %v1218 = vadd.f32 0.0, %v1217
    %1219 = vdwg.mxu0
    %1220 = vmatprep.subr.mxu0 %v378
    %1221 = vmatpush1.msra.mxu0 %v377
    %1222 = vmatprep.subr.mxu0 %v382
    %1223 = vmatpush1.msra.mxu0 %v381
    %1224 = vmatprep.subr.mxu0 %v386
    %1225 = vmatpush1.msra.mxu0 %v385
    %1226 = vmatprep.subr.mxu0 %v390
    %1227 = vmatpush1.msra.mxu0 %v389
    %1228 = vmatprep.subr.mxu0 %v394
    %1229 = vmatpush1.msra.mxu0 %v393
    %1230 = vmatprep.subr.mxu0 %v398
    %1231 = vmatpush1.msra.mxu0 %v397
    %1232 = vmatprep.subr.mxu0 %v402
    %1233 = vmatpush1.msra.mxu0 %v401
    %1234 = vmatprep.subr.mxu0 %v406
    %1235 = vmatpush1.msra.mxu0 %v405
    %1236 = vmatprep.subr.mxu0 %v410
    %1237 = vmatpush1.msra.mxu0 %v409
    %1238 = vmatprep.subr.mxu0 %v414
    %1239 = vmatpush1.msra.mxu0 %v413
    %1240 = vmatprep.subr.mxu0 %v418
    %1241 = vmatpush1.msra.mxu0 %v417
    %1242 = vmatprep.subr.mxu0 %v422
    %1243 = vmatpush1.msra.mxu0 %v421
    %1244 = vmatprep.subr.mxu0 %v426
    %1245 = vmatpush1.msra.mxu0 %v425
    %1246 = vmatprep.subr.mxu0 %v430
    %1247 = vmatpush1.msra.mxu0 %v429
    %1248 = vmatprep.subr.mxu0 %v434
    %1249 = vmatpush1.msra.mxu0 %v433
    %1250 = vmatprep.subr.mxu0 %v438
    %1251 = vmatpush1.msra.mxu0 %v437
    %1252 = vmatprep.subr.mxu0 0.0
    %1253 = vmatpush1.msra.mxu0 0.0
    %1254 = vmatprep.subr.mxu0 0.0
    %1255 = vmatpush1.msra.mxu0 0.0
    %1256 = vmatprep.subr.mxu0 0.0
    %1257 = vmatpush1.msra.mxu0 0.0
    %1258 = vmatprep.subr.mxu0 0.0
    %1259 = vmatpush1.msra.mxu0 0.0
    %1260 = vmatprep.subr.mxu0 0.0
    %1261 = vmatpush1.msra.mxu0 0.0
    %1262 = vmatprep.subr.mxu0 0.0
    %1263 = vmatpush1.msra.mxu0 0.0
    %1264 = vmatprep.subr.mxu0 0.0
    %1265 = vmatpush1.msra.mxu0 0.0
    %1266 = vmatprep.subr.mxu0 0.0
    %1267 = vmatpush1.msra.mxu0 0.0
    %1268 = vmatprep.subr.mxu0 0.0
    %1269 = vmatpush1.msra.mxu0 0.0
    %1270 = vmatprep.subr.mxu0 0.0
    %1271 = vmatpush1.msra.mxu0 0.0
    %1272 = vmatprep.subr.mxu0 0.0
    %1273 = vmatpush1.msra.mxu0 0.0
    %1274 = vmatprep.subr.mxu0 0.0
    %1275 = vmatpush1.msra.mxu0 0.0
    %1276 = vmatprep.subr.mxu0 0.0
    %1277 = vmatpush1.msra.mxu0 0.0
    %1278 = vmatprep.subr.mxu0 0.0
    %1279 = vmatpush1.msra.mxu0 0.0
    %1280 = vmatprep.subr.mxu0 0.0
    %1281 = vmatpush1.msra.mxu0 0.0
    %1282 = vmatprep.subr.mxu0 0.0
    %1283 = vmatpush1.msra.mxu0 0.0
    %1284 = vmatprep.mubr.f32.mxu0 0.0
    %1285 = vmatmul.mubr.f32.gmra.mrb[0].mxu0 %v1147
    %v1286 = vpop.f32.mrb[0].mxu0
    %v1287 = vadd.f32 0.0, %v1286
    %v1288 = vpop.f32.mrb[0].mxu0
    %v1289 = vadd.f32 0.0, %v1288
    %1290 = vdwg.mxu0
    %v1291 = vadd.f32 %v292, %v1216
    %v1292 = vadd.f32 %v294, %v1218
    %v1293 = vadd.f32 %v369, %v1287
    %v1294 = vadd.f32 %v371, %v1289
    %v1295 = vmul.f32 %v1291, 0.5
    %v1296 = vtanh.pop %v1295
    %v1297 = vadd.f32 %v1296, 1.0
    %v1298 = vmul.f32 %v1297, 0.5
    %v1299 = vmul.f32 %v1292, 0.5
    %v1300 = vtanh.pop %v1299
    %v1301 = vadd.f32 %v1300, 1.0
    %v1302 = vmul.f32 %v1301, 0.5
    %v1303 = vtanh.pop %v1293
    %v1304 = vmul.f32 %v1294, 0.5
    %v1305 = vtanh.pop %v1304
    %v1306 = vadd.f32 %v1305, 1.0
    %v1307 = vmul.f32 %v1306, 0.5
    %v1309 = vrot.slane %v1143, 6
    %v1311 = vmul.f32 %v1302, %v1309
    %v1312 = vmul.f32 %v1298, %v1303
    %v1313 = vadd.f32 %v1311, %v1312
    %v1314 = vtanh.pop %v1313
    %v1315 = vmul.f32 %v1307, %v1314
    %1316 = vmatprep.subr.mxu0 %v376
    %1317 = vmatpush1.msra.mxu0 %v375
    %1318 = vmatprep.subr.mxu0 %v380
    %1319 = vmatpush1.msra.mxu0 %v379
    %1320 = vmatprep.subr.mxu0 %v384
    %1321 = vmatpush1.msra.mxu0 %v383
    %1322 = vmatprep.subr.mxu0 %v388
    %1323 = vmatpush1.msra.mxu0 %v387
    %1324 = vmatprep.subr.mxu0 %v392
    %1325 = vmatpush1.msra.mxu0 %v391
    %1326 = vmatprep.subr.mxu0 %v396
    %1327 = vmatpush1.msra.mxu0 %v395
    %1328 = vmatprep.subr.mxu0 %v400
    %1329 = vmatpush1.msra.mxu0 %v399
    %1330 = vmatprep.subr.mxu0 %v404
    %1331 = vmatpush1.msra.mxu0 %v403
    %1332 = vmatprep.subr.mxu0 %v408
    %1333 = vmatpush1.msra.mxu0 %v407
    %1334 = vmatprep.subr.mxu0 %v412
    %1335 = vmatpush1.msra.mxu0 %v411
    %1336 = vmatprep.subr.mxu0 %v416
    %1337 = vmatpush1.msra.mxu0 %v415
    %1338 = vmatprep.subr.mxu0 %v420
    %1339 = vmatpush1.msra.mxu0 %v419
    %1340 = vmatprep.subr.mxu0 %v424
    %1341 = vmatpush1.msra.mxu0 %v423
    %1342 = vmatprep.subr.mxu0 %v428
    %1343 = vmatpush1.msra.mxu0 %v427
    %1344 = vmatprep.subr.mxu0 %v432
    %1345 = vmatpush1.msra.mxu0 %v431
    %1346 = vmatprep.subr.mxu0 %v436
    %1347 = vmatpush1.msra.mxu0 %v435
    %1348 = vmatprep.subr.mxu0 0.0
    %1349 = vmatpush1.msra.mxu0 0.0
    %1350 = vmatprep.subr.mxu0 0.0
    %1351 = vmatpush1.msra.mxu0 0.0
    %1352 = vmatprep.subr.mxu0 0.0
    %1353 = vmatpush1.msra.mxu0 0.0
    %1354 = vmatprep.subr.mxu0 0.0
    %1355 = vmatpush1.msra.mxu0 0.0
    %1356 = vmatprep.subr.mxu0 0.0
    %1357 = vmatpush1.msra.mxu0 0.0
    %1358 = vmatprep.subr.mxu0 0.0
    %1359 = vmatpush1.msra.mxu0 0.0
    %1360 = vmatprep.subr.mxu0 0.0
    %1361 = vmatpush1.msra.mxu0 0.0
    %1362 = vmatprep.subr.mxu0 0.0
    %1363 = vmatpush1.msra.mxu0 0.0
    %1364 = vmatprep.subr.mxu0 0.0
    %1365 = vmatpush1.msra.mxu0 0.0
    %1366 = vmatprep.subr.mxu0 0.0
    %1367 = vmatpush1.msra.mxu0 0.0
    %1368 = vmatprep.subr.mxu0 0.0
    %1369 = vmatpush1.msra.mxu0 0.0
    %1370 = vmatprep.subr.mxu0 0.0
    %1371 = vmatpush1.msra.mxu0 0.0
    %1372 = vmatprep.subr.mxu0 0.0
    %1373 = vmatpush1.msra.mxu0 0.0
    %1374 = vmatprep.subr.mxu0 0.0
    %1375 = vmatpush1.msra.mxu0 0.0
    %1376 = vmatprep.subr.mxu0 0.0
    %1377 = vmatpush1.msra.mxu0 0.0
    %1378 = vmatprep.subr.mxu0 0.0
    %1379 = vmatpush1.msra.mxu0 0.0
    %1380 = vmatprep.mubr.f32.mxu0 0.0
    %1381 = vmatmul.mubr.f32.gmra.mrb[0].mxu0 %v1315
    %v1382 = vpop.f32.mrb[0].mxu0
    %v1383 = vadd.f32 0.0, %v1382
    %v1384 = vpop.f32.mrb[0].mxu0
    %v1385 = vadd.f32 0.0, %v1384
    %1386 = vdwg.mxu0
    %1387 = vmatprep.subr.mxu0 %v378
    %1388 = vmatpush1.msra.mxu0 %v377
    %1389 = vmatprep.subr.mxu0 %v382
    %1390 = vmatpush1.msra.mxu0 %v381
    %1391 = vmatprep.subr.mxu0 %v386
    %1392 = vmatpush1.msra.mxu0 %v385
    %1393 = vmatprep.subr.mxu0 %v390
    %1394 = vmatpush1.msra.mxu0 %v389
    %1395 = vmatprep.subr.mxu0 %v394
    %1396 = vmatpush1.msra.mxu0 %v393
    %1397 = vmatprep.subr.mxu0 %v398
    %1398 = vmatpush1.msra.mxu0 %v397
    %1399 = vmatprep.subr.mxu0 %v402
    %1400 = vmatpush1.msra.mxu0 %v401
    %1401 = vmatprep.subr.mxu0 %v406
    %1402 = vmatpush1.msra.mxu0 %v405
    %1403 = vmatprep.subr.mxu0 %v410
    %1404 = vmatpush1.msra.mxu0 %v409
    %1405 = vmatprep.subr.mxu0 %v414
    %1406 = vmatpush1.msra.mxu0 %v413
    %1407 = vmatprep.subr.mxu0 %v418
    %1408 = vmatpush1.msra.mxu0 %v417
    %1409 = vmatprep.subr.mxu0 %v422
    %1410 = vmatpush1.msra.mxu0 %v421
    %1411 = vmatprep.subr.mxu0 %v426
    %1412 = vmatpush1.msra.mxu0 %v425
    %1413 = vmatprep.subr.mxu0 %v430
    %1414 = vmatpush1.msra.mxu0 %v429
    %1415 = vmatprep.subr.mxu0 %v434
    %1416 = vmatpush1.msra.mxu0 %v433
    %1417 = vmatprep.subr.mxu0 %v438
    %1418 = vmatpush1.msra.mxu0 %v437
    %1419 = vmatprep.subr.mxu0 0.0
    %1420 = vmatpush1.msra.mxu0 0.0
    %1421 = vmatprep.subr.mxu0 0.0
    %1422 = vmatpush1.msra.mxu0 0.0
    %1423 = vmatprep.subr.mxu0 0.0
    %1424 = vmatpush1.msra.mxu0 0.0
    %1425 = vmatprep.subr.mxu0 0.0
    %1426 = vmatpush1.msra.mxu0 0.0
    %1427 = vmatprep.subr.mxu0 0.0
    %1428 = vmatpush1.msra.mxu0 0.0
    %1429 = vmatprep.subr.mxu0 0.0
    %1430 = vmatpush1.msra.mxu0 0.0
    %1431 = vmatprep.subr.mxu0 0.0
    %1432 = vmatpush1.msra.mxu0 0.0
    %1433 = vmatprep.subr.mxu0 0.0
    %1434 = vmatpush1.msra.mxu0 0.0
    %1435 = vmatprep.subr.mxu0 0.0
    %1436 = vmatpush1.msra.mxu0 0.0
    %1437 = vmatprep.subr.mxu0 0.0
    %1438 = vmatpush1.msra.mxu0 0.0
    %1439 = vmatprep.subr.mxu0 0.0
    %1440 = vmatpush1.msra.mxu0 0.0
    %1441 = vmatprep.subr.mxu0 0.0
    %1442 = vmatpush1.msra.mxu0 0.0
    %1443 = vmatprep.subr.mxu0 0.0
    %1444 = vmatpush1.msra.mxu0 0.0
    %1445 = vmatprep.subr.mxu0 0.0
    %1446 = vmatpush1.msra.mxu0 0.0
    %1447 = vmatprep.subr.mxu0 0.0
    %1448 = vmatpush1.msra.mxu0 0.0
    %1449 = vmatprep.subr.mxu0 0.0
    %1450 = vmatpush1.msra.mxu0 0.0
    %1451 = vmatprep.mubr.f32.mxu0 0.0
    %1452 = vmatmul.mubr.f32.gmra.mrb[0].mxu0 %v1315
    %v1453 = vpop.f32.mrb[0].mxu0
    %v1454 = vadd.f32 0.0, %v1453
    %v1455 = vpop.f32.mrb[0].mxu0
    %v1456 = vadd.f32 0.0, %v1455
    %1457 = vdwg.mxu0
    %v1462 = vrot.slane %v1383, 6
    %v1463 = vrot.slane %v1385, 6
    %v1464 = vrot.slane %v1454, 6
    %v1465 = vrot.slane %v1456, 6
    %v1470 = vadd.f32 %v292, %v1462
    %v1471 = vadd.f32 %v294, %v1463
    %v1472 = vadd.f32 %v369, %v1464
    %v1473 = vadd.f32 %v371, %v1465
    %v1474 = vmul.f32 %v1470, 0.5
    %v1475 = vtanh.pop %v1474
    %v1476 = vadd.f32 %v1475, 1.0
    %v1477 = vmul.f32 %v1476, 0.5
    %v1478 = vmul.f32 %v1471, 0.5
    %v1479 = vtanh.pop %v1478
    %v1480 = vadd.f32 %v1479, 1.0
    %v1481 = vmul.f32 %v1480, 0.5
    %v1482 = vtanh.pop %v1472
    %v1483 = vmul.f32 %v1473, 0.5
    %v1484 = vtanh.pop %v1483
    %v1485 = vadd.f32 %v1484, 1.0
    %v1486 = vmul.f32 %v1485, 0.5
    %v1488 = vrot.slane %v1313, 6
    %v1490 = vmul.f32 %v1481, %v1488
    %v1491 = vmul.f32 %v1477, %v1482
    %v1492 = vadd.f32 %v1490, %v1491
    %v1493 = vtanh.pop %v1492
    %v1494 = vmul.f32 %v1486, %v1493
    %v1496 = vrot.slane %v1494, 2
    %1498 = vmatprep.subr.mxu0 %v376
    %1499 = vmatpush1.msra.mxu0 %v375
    %1500 = vmatprep.subr.mxu0 %v380
    %1501 = vmatpush1.msra.mxu0 %v379
    %1502 = vmatprep.subr.mxu0 %v384
    %1503 = vmatpush1.msra.mxu0 %v383
    %1504 = vmatprep.subr.mxu0 %v388
    %1505 = vmatpush1.msra.mxu0 %v387
    %1506 = vmatprep.subr.mxu0 %v392
    %1507 = vmatpush1.msra.mxu0 %v391
    %1508 = vmatprep.subr.mxu0 %v396
    %1509 = vmatpush1.msra.mxu0 %v395
    %1510 = vmatprep.subr.mxu0 %v400
    %1511 = vmatpush1.msra.mxu0 %v399
    %1512 = vmatprep.subr.mxu0 %v404
    %1513 = vmatpush1.msra.mxu0 %v403
    %1514 = vmatprep.subr.mxu0 %v408
    %1515 = vmatpush1.msra.mxu0 %v407
    %1516 = vmatprep.subr.mxu0 %v412
    %1517 = vmatpush1.msra.mxu0 %v411
    %1518 = vmatprep.subr.mxu0 %v416
    %1519 = vmatpush1.msra.mxu0 %v415
    %1520 = vmatprep.subr.mxu0 %v420
    %1521 = vmatpush1.msra.mxu0 %v419
    %1522 = vmatprep.subr.mxu0 %v424
    %1523 = vmatpush1.msra.mxu0 %v423
    %1524 = vmatprep.subr.mxu0 %v428
    %1525 = vmatpush1.msra.mxu0 %v427
    %1526 = vmatprep.subr.mxu0 %v432
    %1527 = vmatpush1.msra.mxu0 %v431
    %1528 = vmatprep.subr.mxu0 %v436
    %1529 = vmatpush1.msra.mxu0 %v435
    %1530 = vmatprep.subr.mxu0 0.0
    %1531 = vmatpush1.msra.mxu0 0.0
    %1532 = vmatprep.subr.mxu0 0.0
    %1533 = vmatpush1.msra.mxu0 0.0
    %1534 = vmatprep.subr.mxu0 0.0
    %1535 = vmatpush1.msra.mxu0 0.0
    %1536 = vmatprep.subr.mxu0 0.0
    %1537 = vmatpush1.msra.mxu0 0.0
    %1538 = vmatprep.subr.mxu0 0.0
    %1539 = vmatpush1.msra.mxu0 0.0
    %1540 = vmatprep.subr.mxu0 0.0
    %1541 = vmatpush1.msra.mxu0 0.0
    %1542 = vmatprep.subr.mxu0 0.0
    %1543 = vmatpush1.msra.mxu0 0.0
    %1544 = vmatprep.subr.mxu0 0.0
    %1545 = vmatpush1.msra.mxu0 0.0
    %1546 = vmatprep.subr.mxu0 0.0
    %1547 = vmatpush1.msra.mxu0 0.0
    %1548 = vmatprep.subr.mxu0 0.0
    %1549 = vmatpush1.msra.mxu0 0.0
    %1550 = vmatprep.subr.mxu0 0.0
    %1551 = vmatpush1.msra.mxu0 0.0
    %1552 = vmatprep.subr.mxu0 0.0
    %1553 = vmatpush1.msra.mxu0 0.0
    %1554 = vmatprep.subr.mxu0 0.0
    %1555 = vmatpush1.msra.mxu0 0.0
    %1556 = vmatprep.subr.mxu0 0.0
    %1557 = vmatpush1.msra.mxu0 0.0
    %1558 = vmatprep.subr.mxu0 0.0
    %1559 = vmatpush1.msra.mxu0 0.0
    %1560 = vmatprep.subr.mxu0 0.0
    %1561 = vmatpush1.msra.mxu0 0.0
    %1562 = vmatprep.mubr.f32.mxu0 0.0
    %1563 = vmatmul.mubr.f32.gmra.mrb[0].mxu0 %v1496
    %v1564 = vpop.f32.mrb[0].mxu0
    %v1565 = vadd.f32 0.0, %v1564
    %v1566 = vpop.f32.mrb[0].mxu0
    %v1567 = vadd.f32 0.0, %v1566
    %1568 = vdwg.mxu0
    %1569 = vmatprep.subr.mxu0 %v378
    %1570 = vmatpush1.msra.mxu0 %v377
    %1571 = vmatprep.subr.mxu0 %v382
    %1572 = vmatpush1.msra.mxu0 %v381
    %1573 = vmatprep.subr.mxu0 %v386
    %1574 = vmatpush1.msra.mxu0 %v385
    %1575 = vmatprep.subr.mxu0 %v390
    %1576 = vmatpush1.msra.mxu0 %v389
    %1577 = vmatprep.subr.mxu0 %v394
    %1578 = vmatpush1.msra.mxu0 %v393
    %1579 = vmatprep.subr.mxu0 %v398
    %1580 = vmatpush1.msra.mxu0 %v397
    %1581 = vmatprep.subr.mxu0 %v402
    %1582 = vmatpush1.msra.mxu0 %v401
    %1583 = vmatprep.subr.mxu0 %v406
    %1584 = vmatpush1.msra.mxu0 %v405
    %1585 = vmatprep.subr.mxu0 %v410
    %1586 = vmatpush1.msra.mxu0 %v409
    %1587 = vmatprep.subr.mxu0 %v414
    %1588 = vmatpush1.msra.mxu0 %v413
    %1589 = vmatprep.subr.mxu0 %v418
    %1590 = vmatpush1.msra.mxu0 %v417
    %1591 = vmatprep.subr.mxu0 %v422
    %1592 = vmatpush1.msra.mxu0 %v421
    %1593 = vmatprep.subr.mxu0 %v426
    %1594 = vmatpush1.msra.mxu0 %v425
    %1595 = vmatprep.subr.mxu0 %v430
    %1596 = vmatpush1.msra.mxu0 %v429
    %1597 = vmatprep.subr.mxu0 %v434
    %1598 = vmatpush1.msra.mxu0 %v433
    %1599 = vmatprep.subr.mxu0 %v438
    %1600 = vmatpush1.msra.mxu0 %v437
    %1601 = vmatprep.subr.mxu0 0.0
    %1602 = vmatpush1.msra.mxu0 0.0
    %1603 = vmatprep.subr.mxu0 0.0
    %1604 = vmatpush1.msra.mxu0 0.0
    %1605 = vmatprep.subr.mxu0 0.0
    %1606 = vmatpush1.msra.mxu0 0.0
    %1607 = vmatprep.subr.mxu0 0.0
    %1608 = vmatpush1.msra.mxu0 0.0
    %1609 = vmatprep.subr.mxu0 0.0
    %1610 = vmatpush1.msra.mxu0 0.0
    %1611 = vmatprep.subr.mxu0 0.0
    %1612 = vmatpush1.msra.mxu0 0.0
    %1613 = vmatprep.subr.mxu0 0.0
    %1614 = vmatpush1.msra.mxu0 0.0
    %1615 = vmatprep.subr.mxu0 0.0
    %1616 = vmatpush1.msra.mxu0 0.0
    %1617 = vmatprep.subr.mxu0 0.0
    %1618 = vmatpush1.msra.mxu0 0.0
    %1619 = vmatprep.subr.mxu0 0.0
    %1620 = vmatpush1.msra.mxu0 0.0
    %1621 = vmatprep.subr.mxu0 0.0
    %1622 = vmatpush1.msra.mxu0 0.0
    %1623 = vmatprep.subr.mxu0 0.0
    %1624 = vmatpush1.msra.mxu0 0.0
    %1625 = vmatprep.subr.mxu0 0.0
    %1626 = vmatpush1.msra.mxu0 0.0
    %1627 = vmatprep.subr.mxu0 0.0
    %1628 = vmatpush1.msra.mxu0 0.0
    %1629 = vmatprep.subr.mxu0 0.0
    %1630 = vmatpush1.msra.mxu0 0.0
    %1631 = vmatprep.subr.mxu0 0.0
    %1632 = vmatpush1.msra.mxu0 0.0
    %1633 = vmatprep.mubr.f32.mxu0 0.0
    %1634 = vmatmul.mubr.f32.gmra.mrb[0].mxu0 %v1496
    %v1635 = vpop.f32.mrb[0].mxu0
    %v1636 = vadd.f32 0.0, %v1635
    %v1637 = vpop.f32.mrb[0].mxu0
    %v1638 = vadd.f32 0.0, %v1637
    %1639 = vdwg.mxu0
    %v1644 = vrot.slane %v1565, 4
    %v1645 = vrot.slane %v1567, 4
    %v1646 = vrot.slane %v1636, 4
    %v1647 = vrot.slane %v1638, 4
    %v1652 = vadd.f32 %v292, %v1644
    %v1653 = vadd.f32 %v294, %v1645
    %v1654 = vadd.f32 %v369, %v1646
    %v1655 = vadd.f32 %v371, %v1647
    %v1656 = vmul.f32 %v1652, 0.5
    %v1657 = vtanh.pop %v1656
    %v1658 = vadd.f32 %v1657, 1.0
    %v1659 = vmul.f32 %v1658, 0.5
    %v1660 = vmul.f32 %v1653, 0.5
    %v1661 = vtanh.pop %v1660
    %v1662 = vadd.f32 %v1661, 1.0
    %v1663 = vmul.f32 %v1662, 0.5
    %v1664 = vtanh.pop %v1654
    %v1665 = vmul.f32 %v1655, 0.5
    %v1666 = vtanh.pop %v1665
    %v1667 = vadd.f32 %v1666, 1.0
    %v1668 = vmul.f32 %v1667, 0.5
    %v1670 = vrot.slane %v1492, 6
    %v1672 = vmul.f32 %v1663, %v1670
    %v1673 = vmul.f32 %v1659, %v1664
    %v1674 = vadd.f32 %v1672, %v1673
    %v1675 = vtanh.pop %v1674
    %v1676 = vmul.f32 %v1668, %v1675
    %v1678 = vrot.slane %v1676, 4
    %1680 = vmatprep.subr.mxu0 %v376
    %1681 = vmatpush1.msra.mxu0 %v375
    %1682 = vmatprep.subr.mxu0 %v380
    %1683 = vmatpush1.msra.mxu0 %v379
    %1684 = vmatprep.subr.mxu0 %v384
    %1685 = vmatpush1.msra.mxu0 %v383
    %1686 = vmatprep.subr.mxu0 %v388
    %1687 = vmatpush1.msra.mxu0 %v387
    %1688 = vmatprep.subr.mxu0 %v392
    %1689 = vmatpush1.msra.mxu0 %v391
    %1690 = vmatprep.subr.mxu0 %v396
    %1691 = vmatpush1.msra.mxu0 %v395
    %1692 = vmatprep.subr.mxu0 %v400
    %1693 = vmatpush1.msra.mxu0 %v399
    %1694 = vmatprep.subr.mxu0 %v404
    %1695 = vmatpush1.msra.mxu0 %v403
    %1696 = vmatprep.subr.mxu0 %v408
    %1697 = vmatpush1.msra.mxu0 %v407
    %1698 = vmatprep.subr.mxu0 %v412
    %1699 = vmatpush1.msra.mxu0 %v411
    %1700 = vmatprep.subr.mxu0 %v416
    %1701 = vmatpush1.msra.mxu0 %v415
    %1702 = vmatprep.subr.mxu0 %v420
    %1703 = vmatpush1.msra.mxu0 %v419
    %1704 = vmatprep.subr.mxu0 %v424
    %1705 = vmatpush1.msra.mxu0 %v423
    %1706 = vmatprep.subr.mxu0 %v428
    %1707 = vmatpush1.msra.mxu0 %v427
    %1708 = vmatprep.subr.mxu0 %v432
    %1709 = vmatpush1.msra.mxu0 %v431
    %1710 = vmatprep.subr.mxu0 %v436
    %1711 = vmatpush1.msra.mxu0 %v435
    %1712 = vmatprep.subr.mxu0 0.0
    %1713 = vmatpush1.msra.mxu0 0.0
    %1714 = vmatprep.subr.mxu0 0.0
    %1715 = vmatpush1.msra.mxu0 0.0
    %1716 = vmatprep.subr.mxu0 0.0
    %1717 = vmatpush1.msra.mxu0 0.0
    %1718 = vmatprep.subr.mxu0 0.0
    %1719 = vmatpush1.msra.mxu0 0.0
    %1720 = vmatprep.subr.mxu0 0.0
    %1721 = vmatpush1.msra.mxu0 0.0
    %1722 = vmatprep.subr.mxu0 0.0
    %1723 = vmatpush1.msra.mxu0 0.0
    %1724 = vmatprep.subr.mxu0 0.0
    %1725 = vmatpush1.msra.mxu0 0.0
    %1726 = vmatprep.subr.mxu0 0.0
    %1727 = vmatpush1.msra.mxu0 0.0
    %1728 = vmatprep.subr.mxu0 0.0
    %1729 = vmatpush1.msra.mxu0 0.0
    %1730 = vmatprep.subr.mxu0 0.0
    %1731 = vmatpush1.msra.mxu0 0.0
    %1732 = vmatprep.subr.mxu0 0.0
    %1733 = vmatpush1.msra.mxu0 0.0
    %1734 = vmatprep.subr.mxu0 0.0
    %1735 = vmatpush1.msra.mxu0 0.0
    %1736 = vmatprep.subr.mxu0 0.0
    %1737 = vmatpush1.msra.mxu0 0.0
    %1738 = vmatprep.subr.mxu0 0.0
    %1739 = vmatpush1.msra.mxu0 0.0
    %1740 = vmatprep.subr.mxu0 0.0
    %1741 = vmatpush1.msra.mxu0 0.0
    %1742 = vmatprep.subr.mxu0 0.0
    %1743 = vmatpush1.msra.mxu0 0.0
    %1744 = vmatprep.mubr.f32.mxu0 0.0
    %1745 = vmatmul.mubr.f32.gmra.mrb[0].mxu0 %v1678
    %v1746 = vpop.f32.mrb[0].mxu0
    %v1747 = vadd.f32 0.0, %v1746
    %v1748 = vpop.f32.mrb[0].mxu0
    %v1749 = vadd.f32 0.0, %v1748
    %1750 = vdwg.mxu0
    %1751 = vmatprep.subr.mxu0 %v378
    %1752 = vmatpush1.msra.mxu0 %v377
    %1753 = vmatprep.subr.mxu0 %v382
    %1754 = vmatpush1.msra.mxu0 %v381
    %1755 = vmatprep.subr.mxu0 %v386
    %1756 = vmatpush1.msra.mxu0 %v385
    %1757 = vmatprep.subr.mxu0 %v390
    %1758 = vmatpush1.msra.mxu0 %v389
    %1759 = vmatprep.subr.mxu0 %v394
    %1760 = vmatpush1.msra.mxu0 %v393
    %1761 = vmatprep.subr.mxu0 %v398
    %1762 = vmatpush1.msra.mxu0 %v397
    %1763 = vmatprep.subr.mxu0 %v402
    %1764 = vmatpush1.msra.mxu0 %v401
    %1765 = vmatprep.subr.mxu0 %v406
    %1766 = vmatpush1.msra.mxu0 %v405
    %1767 = vmatprep.subr.mxu0 %v410
    %1768 = vmatpush1.msra.mxu0 %v409
    %1769 = vmatprep.subr.mxu0 %v414
    %1770 = vmatpush1.msra.mxu0 %v413
    %1771 = vmatprep.subr.mxu0 %v418
    %1772 = vmatpush1.msra.mxu0 %v417
    %1773 = vmatprep.subr.mxu0 %v422
    %1774 = vmatpush1.msra.mxu0 %v421
    %1775 = vmatprep.subr.mxu0 %v426
    %1776 = vmatpush1.msra.mxu0 %v425
    %1777 = vmatprep.subr.mxu0 %v430
    %1778 = vmatpush1.msra.mxu0 %v429
    %1779 = vmatprep.subr.mxu0 %v434
    %1780 = vmatpush1.msra.mxu0 %v433
    %1781 = vmatprep.subr.mxu0 %v438
    %1782 = vmatpush1.msra.mxu0 %v437
    %1783 = vmatprep.subr.mxu0 0.0
    %1784 = vmatpush1.msra.mxu0 0.0
    %1785 = vmatprep.subr.mxu0 0.0
    %1786 = vmatpush1.msra.mxu0 0.0
    %1787 = vmatprep.subr.mxu0 0.0
    %1788 = vmatpush1.msra.mxu0 0.0
    %1789 = vmatprep.subr.mxu0 0.0
    %1790 = vmatpush1.msra.mxu0 0.0
    %1791 = vmatprep.subr.mxu0 0.0
    %1792 = vmatpush1.msra.mxu0 0.0
    %1793 = vmatprep.subr.mxu0 0.0
    %1794 = vmatpush1.msra.mxu0 0.0
    %1795 = vmatprep.subr.mxu0 0.0
    %1796 = vmatpush1.msra.mxu0 0.0
    %1797 = vmatprep.subr.mxu0 0.0
    %1798 = vmatpush1.msra.mxu0 0.0
    %1799 = vmatprep.subr.mxu0 0.0
    %1800 = vmatpush1.msra.mxu0 0.0
    %1801 = vmatprep.subr.mxu0 0.0
    %1802 = vmatpush1.msra.mxu0 0.0
    %1803 = vmatprep.subr.mxu0 0.0
    %1804 = vmatpush1.msra.mxu0 0.0
    %1805 = vmatprep.subr.mxu0 0.0
    %1806 = vmatpush1.msra.mxu0 0.0
    %1807 = vmatprep.subr.mxu0 0.0
    %1808 = vmatpush1.msra.mxu0 0.0
    %1809 = vmatprep.subr.mxu0 0.0
    %1810 = vmatpush1.msra.mxu0 0.0
    %1811 = vmatprep.subr.mxu0 0.0
    %1812 = vmatpush1.msra.mxu0 0.0
    %1813 = vmatprep.subr.mxu0 0.0
    %1814 = vmatpush1.msra.mxu0 0.0
    %1815 = vmatprep.mubr.f32.mxu0 0.0
    %1816 = vmatmul.mubr.f32.gmra.mrb[0].mxu0 %v1678
    %v1817 = vpop.f32.mrb[0].mxu0
    %v1818 = vadd.f32 0.0, %v1817
    %v1819 = vpop.f32.mrb[0].mxu0
    %v1820 = vadd.f32 0.0, %v1819
    %1821 = vdwg.mxu0
    %v1826 = vrot.slane %v1747, 2
    %v1827 = vrot.slane %v1749, 2
    %v1828 = vrot.slane %v1818, 2
    %v1829 = vrot.slane %v1820, 2
    %v1834 = vadd.f32 %v292, %v1826
    %v1835 = vadd.f32 %v294, %v1827
    %v1836 = vadd.f32 %v369, %v1828
    %v1837 = vadd.f32 %v371, %v1829
    %v1838 = vmul.f32 %v1834, 0.5
    %v1839 = vtanh.pop %v1838
    %v1840 = vadd.f32 %v1839, 1.0
    %v1841 = vmul.f32 %v1840, 0.5
    %v1842 = vmul.f32 %v1835, 0.5
    %v1843 = vtanh.pop %v1842
    %v1844 = vadd.f32 %v1843, 1.0
    %v1845 = vmul.f32 %v1844, 0.5
    %v1846 = vtanh.pop %v1836
    %v1847 = vmul.f32 %v1837, 0.5
    %v1848 = vtanh.pop %v1847
    %v1849 = vadd.f32 %v1848, 1.0
    %v1850 = vmul.f32 %v1849, 0.5
    %v1852 = vrot.slane %v1674, 6
    %v1854 = vmul.f32 %v1845, %v1852
    %v1855 = vmul.f32 %v1841, %v1846
    %v1856 = vadd.f32 %v1854, %v1855
    %v1857 = vtanh.pop %v1856
    %v1858 = vmul.f32 %v1850, %v1857
    %1859 = vst [vmem:[#allocation2 - $0x6] sm:$0xc0] %v1858
    %1860 = vst [vmem:[#allocation3 - $0x6] sm:$0xc0] %v1856
    // Predicated region
    $region34: #{tpu_custom_call.1} parent=1 // pred_check
      %p1861 = pneg %p59
    $region35: #{tpu_custom_call.1} parent=1 // pred_check_branch
      %1863 = sbr.rel (%p1861) target = $region37
    $region36: #{tpu_custom_call.1} parent=1 // pred_region
      %1864 = vst [vmem:[#allocation10 - $0x6] sm:$0xc0] %v1858
    $region37: #{tpu_custom_call.1} parent=1 // pred_fallthru
      _
    // Predicated region
    $region38: #{tpu_custom_call.1} parent=1 // pred_check
      _
    $region39: #{tpu_custom_call.1} parent=1 // pred_check_branch
      %1866 = sbr.rel (0) target = $region41
    $region40: #{tpu_custom_call.1} parent=1 // pred_region
      %s1868 = ssub.s32 32, 32
      %1869 = vsyncadd [#allocation6], %s1868
      %s1871 = sshll.u32 [#allocation10], 4
      %s1872 = int_to_ptr.vmem [resolvable:$true] %s1871
      %1874 = dma.vmem_to_hbm [thread:$0]  %s1872, 32, %s4, [#allocation6]
    $region41: #{tpu_custom_call.1} parent=1 // pred_fallthru
      _
    // Predicated region
    $region42: #{tpu_custom_call.1} parent=1 // pred_check
      _
    $region43: #{tpu_custom_call.1} parent=1 // pred_check_branch
      %1876 = sbr.rel (0) target = $region45
    $region44: #{tpu_custom_call.1} parent=1 // pred_region
      %1877 = dma.done [#allocation6], 32
    $region45: #{tpu_custom_call.1} parent=1 // pred_fallthru
      _
    %1878 = vsyncpa [#allocation5], 1
    %1879 = vsyncpa [#allocation8], 1
    %1880 = vsyncpa [#allocation6], 1

</llo_original>
